<compile_context>
chip_gen: v6e
topology: v6e:2x2x1
jax: 0.10.0
libtpu: 0.0.40
codegen_flags: <defaults>
</compile_context>

<pallas_src>
import functools

import jax
import jax.numpy as jnp
from jax.experimental import pallas as pl
from jax.experimental.pallas import tpu as pltpu

EPS = 1e-5  # PyTorch BatchNorm2d default


# --------------------------------------------------------------------------- #
# Pass 1: conv (in-kernel 3x3, 9 shifted matmuls) + per-image BN partial stats
# --------------------------------------------------------------------------- #
def _conv_stats_kernel(x_ref, w_ref, y_ref, stats_ref, *, h, w, c):
    """One image per grid step.

    - Zero-pads the (h, w, c) block in VMEM (no HBM im2col / padded copy).
    - 3x3 SAME conv = sum over 9 taps of (h*w, c)bf16 @ (c, c)bf16 on the MXU
      with a single f32 accumulator.
    - Writes y as bf16 and per-image BN partial sums (sum, sum_sq) computed
      from the f32 accumulator, so the grid axis can be "parallel" (v7x 2 TCs)
      with no cross-step accumulator.
    """
    xb = x_ref[...].astype(jnp.bfloat16)                 # (h, w, c)

    # In-VMEM zero padding (concat along non-minor axes only).
    zrow = jnp.zeros((1, w, c), jnp.bfloat16)
    zcol = jnp.zeros((h + 2, 1, c), jnp.bfloat16)
    xp = jnp.concatenate([zrow, xb, zrow], axis=0)       # (h+2, w,   c)
    xp = jnp.concatenate([zcol, xp, zcol], axis=1)       # (h+2, w+2, c)

    acc = jnp.zeros((h * w, c), jnp.float32)
    for t in range(9):                                   # static unroll, 9 taps
        dy, dx = t // 3, t % 3
        patch = xp[dy:dy + h, dx:dx + w, :].reshape(h * w, c)
        acc = acc + jnp.dot(patch, w_ref[t], preferred_element_type=jnp.float32)

    # bf16 y (halves writeback + pass-2 read); stats from the f32 accumulator.
    y_ref[...] = acc.reshape(h, w, c).astype(y_ref.dtype)
    stats_ref[0:1, :] = jnp.sum(acc, axis=0, keepdims=True)
    stats_ref[1:2, :] = jnp.sum(acc * acc, axis=0, keepdims=True)


# --------------------------------------------------------------------------- #
# Pass 2: normalize + ReLU + residual (lane-dense, f32 math)
# --------------------------------------------------------------------------- #
def _normalize_kernel(y_ref, x_ref, ss_ref, out_ref):
    y = y_ref[...].astype(jnp.float32)                   # bf16 -> f32
    r = x_ref[...].astype(jnp.float32)                   # residual, caller dtype
    normed = y * ss_ref[0:1, :] + ss_ref[1:2, :]         # fused scale/shift
    out_ref[...] = (jnp.maximum(normed, 0.0) + r).astype(out_ref.dtype)


# --------------------------------------------------------------------------- #
# Helpers
# --------------------------------------------------------------------------- #
def _pick_tile(m, target, granule=16):
    """Largest t <= target with t % granule == 0 and m % t == 0.

    Prefers 16-row granules (bf16 sublane packing), falls back to 8, then to
    the full dimension.
    """
    if m <= target:
        return m
    for g in sorted({granule, 8}, reverse=True):
        t = (min(target, m) // g) * g
        while t >= g:
            if m % t == 0:
                return t
            t -= g
    # TODO(synk): switch to cdiv grid + masked tail tile for awkward m instead
    # of a full-size fallback block.
    return m


# --------------------------------------------------------------------------- #
# Wrapper
# --------------------------------------------------------------------------- #
def res_block_nhwc(x_nhwc, w_oihw, gamma, beta, *,
                   flat_tile=2048,
                   # 32 MiB fits every generation (v7x has 64 MiB physical);
                   # raise toward 64-96 MiB on v5e/v6e for very large C.
                   vmem_limit_bytes=32 * 1024 * 1024):
    n, h, w, c = x_nhwc.shape
    m = n * h * w
    out_dtype = x_nhwc.dtype           # residual/output keep the caller's dtype

    # conv weight (O, I, 3, 3) -> (3, 3, I, O) -> (9, I, O), tap-major (dy*3+dx)
    wtaps = jnp.transpose(w_oihw, (2, 3, 1, 0)).reshape(9, c, c).astype(jnp.bfloat16)

    # ---------------- pass 1: conv + per-image BN partial stats --------------
    # TODO(synk): for images too large for one VMEM block (H*W*C*itemsize
    # beyond a few MiB), add an H-tile grid axis with a manual haloed row DMA.
    cost1 = pl.CostEstimate(
        flops=2 * m * 9 * c * c + 4 * m * c,
        transcendentals=0,
        bytes_accessed=(x_nhwc.size * x_nhwc.dtype.itemsize
                        + wtaps.size * 2 + m * c * 2 + n * 2 * c * 4),
    )
    y, pstats = pl.pallas_call(
        functools.partial(_conv_stats_kernel, h=h, w=w, c=c),
        out_shape=(
            jax.ShapeDtypeStruct((n, h, w, c), jnp.bfloat16),  # conv output y
            jax.ShapeDtypeStruct((n, 2, c), jnp.float32),      # per-image [sum; sum_sq]
        ),
        grid=(n,),
        in_specs=[
            pl.BlockSpec((None, h, w, c), lambda i: (i, 0, 0, 0)),  # one image
            # Constant-index weights: TODO(synk): pipeline_mode=pl.Buffered(1)
            # would drop the unused second buffer (matters for C >= 512 on v7x).
            pl.BlockSpec((9, c, c), lambda i: (0, 0, 0)),
        ],
        out_specs=(
            pl.BlockSpec((None, h, w, c), lambda i: (i, 0, 0, 0)),
            pl.BlockSpec((None, 2, c), lambda i: (i, 0, 0)),
        ),
        compiler_params=pltpu.CompilerParams(
            dimension_semantics=("parallel",),     # independent images -> 2 TCs on v7x
            vmem_limit_bytes=vmem_limit_bytes,
        ),
        cost_estimate=cost1,
    )(x_nhwc, wtaps)

    # ---- tiny JAX reduce: combine per-image partials -> [scale; shift] ------
    # var clamped >= 0 before rsqrt (f32 E[y^2]-mean^2 cancellation guard).
    inv_m = 1.0 / float(m)
    mean = jnp.sum(pstats[:, 0, :], axis=0) * inv_m                    # (c,)
    var = jnp.maximum(jnp.sum(pstats[:, 1, :], axis=0) * inv_m - mean * mean, 0.0)
    scale = gamma.astype(jnp.float32) * jax.lax.rsqrt(var + EPS)
    shift = beta.astype(jnp.float32) - mean * scale
    ss = jnp.stack([scale, shift], axis=0)                             # (2, c)

    # ------------- pass 2: normalize + ReLU + residual -----------------------
    y_flat = y.reshape(m, c)                 # contiguous reshape (free)
    x_flat = x_nhwc.reshape(m, c)            # residual = pre-conv input, caller dtype
    if 128 % c == 0 and (m * c) % 128 == 0:
        # Lane-dense repack: (m, c) -> (m*c/128, 128) so every block row is a
        # full-width vreg (unmasked vst). Channel pattern repeats every c lanes.
        mf, lane = (m * c) // 128, 128
        y2 = y_flat.reshape(mf, lane)
        x2 = x_flat.reshape(mf, lane)
        ss2 = jnp.tile(ss, (1, lane // c))   # (2, 128)
    else:
        # c % 128 == 0 is already lane-dense as (m, c); widths like 96/192 that
        # neither divide nor are multiples of 128 will hit masked stores.
        mf, lane = m, c
        y2, x2, ss2 = y_flat, x_flat, ss

    tf = _pick_tile(mf, flat_tile, granule=16)
    cost2 = pl.CostEstimate(
        flops=4 * mf * lane,
        transcendentals=0,
        bytes_accessed=mf * lane * (2 + x2.dtype.itemsize
                                    + jnp.dtype(out_dtype).itemsize) + 2 * lane * 4,
    )
    out = pl.pallas_call(
        _normalize_kernel,
        out_shape=jax.ShapeDtypeStruct((mf, lane), out_dtype),
        grid=(mf // tf,),
        in_specs=[
            pl.BlockSpec((tf, lane), lambda k: (k, 0)),   # y tile (bf16)
            pl.BlockSpec((tf, lane), lambda k: (k, 0)),   # residual tile
            pl.BlockSpec((2, lane), lambda k: (0, 0)),    # scale/shift, resident
        ],
        out_specs=pl.BlockSpec((tf, lane), lambda k: (k, 0)),
        compiler_params=pltpu.CompilerParams(
            dimension_semantics=("parallel",),            # shards across v7x's 2 TCs
            vmem_limit_bytes=vmem_limit_bytes,
        ),
        cost_estimate=cost2,
    )(y2, x2, ss2)

    return out.reshape(n, h, w, c)


def res_block(x_nchw, w_oihw, gamma, beta, **kw):
    """NCHW public API matching the PyTorch module.

    NOTE: each boundary transpose is a full extra HBM round trip; callers that
    can stay NHWC should use res_block_nhwc directly.
    """
    x_nhwc = jnp.transpose(x_nchw, (0, 2, 3, 1))
    out = res_block_nhwc(x_nhwc, w_oihw, gamma, beta, **kw)
    return jnp.transpose(out, (0, 3, 1, 2))


# --------------------------------------------------------------------------- #
# Pure-JAX reference (same semantics as the PyTorch module in train mode)
# --------------------------------------------------------------------------- #
def reference_res_block(x_nchw, w_oihw, gamma, beta):
    y = jax.lax.conv_general_dilated(
        x_nchw, w_oihw, window_strides=(1, 1), padding="SAME",
        dimension_numbers=("NCHW", "OIHW", "NCHW"),
        precision=jax.lax.Precision.HIGHEST,
    )
    mean = jnp.mean(y, axis=(0, 2, 3), keepdims=True)
    var = jnp.mean((y - mean) ** 2, axis=(0, 2, 3), keepdims=True)
    normed = (y - mean) * jax.lax.rsqrt(var + EPS)
    normed = normed * gamma.reshape(1, -1, 1, 1) + beta.reshape(1, -1, 1, 1)
    return jnp.maximum(normed, 0.0) + x_nchw


if __name__ == "__main__":
    key = jax.random.PRNGKey(0)
    N, C, H, W = 2, 4, 16, 16

    k_x, k_w = jax.random.split(key)
    # Inputs/weights pre-rounded to bf16 (stored f32) so bf16 x bf16 products
    # are exact in the f32 MXU accumulator; the remaining deviation from the
    # f32 HIGHEST reference is dominated by the bf16 storage of y
    # (<= ~2^-9 relative on y -> ~5e-3 absolute on the output here), hence the
    # 1e-2 tolerance below.
    x = jax.random.normal(k_x, (N, C, H, W), dtype=jnp.float32)
    x = x.astype(jnp.bfloat16).astype(jnp.float32)

    # Deterministic parameter init mirroring the PyTorch __init__:
    # kaiming_normal_(nonlinearity='relu'): std = sqrt(2 / fan_in), fan_in = C*3*3
    fan_in = C * 3 * 3
    std = (2.0 / fan_in) ** 0.5
    conv_w = jax.random.normal(k_w, (C, C, 3, 3), dtype=jnp.float32) * std
    conv_w = conv_w.astype(jnp.bfloat16).astype(jnp.float32)
    bn_gamma = jnp.full((C,), 0.5, dtype=jnp.float32)
    bn_beta = jnp.zeros((C,), dtype=jnp.float32)

    # flat_tile=8 purely to exercise the multi-tile "parallel" normalize path
    # at this toy shape (mf = 16); real shapes should keep the 2048 default.
    out = res_block(x, conv_w, bn_gamma, bn_beta, flat_tile=8)
    out = jax.block_until_ready(out)

    ref = reference_res_block(x, conv_w, bn_gamma, bn_beta)
    assert out.shape == (N, C, H, W)
    assert jnp.allclose(out, ref, rtol=1e-2, atol=1e-2), \
        float(jnp.max(jnp.abs(out - ref)))

    print("KERNEL_OK")
</pallas_src>

<mosaic_0001>
module attributes {stable_mosaic.version = 11 : i64} {
  func.func @_conv_stats_kernel(%arg0: i32, %arg1: memref<1x16x16x4xf32, #tpu.memory_space<vmem>>, %arg2: memref<9x4x4xbf16, #tpu.memory_space<vmem>>, %arg3: memref<1x16x16x4xbf16, #tpu.memory_space<vmem>>, %arg4: memref<1x2x4xf32, #tpu.memory_space<vmem>>) attributes {dimension_semantics = [#tpu.dimension_semantics<parallel>], iteration_bounds = array<i64: 2>, scalar_prefetch = 0 : i64, scratch_operands = 0 : i64, tpu.core_type = #tpu.core_type<tc>, window_params = [{transform_indices = @transform_0, window_bounds = array<i64: 1, 16, 16, 4>}, {pipeline_mode = #tpu.pipeline_mode<synchronous>, transform_indices = @transform_1, window_bounds = array<i64: 9, 4, 4>}, {transform_indices = @transform_2, window_bounds = array<i64: 1, 16, 16, 4>}, {transform_indices = @transform_3, window_bounds = array<i64: 1, 2, 4>}]} {
    %c0 = arith.constant 0 : index
    %c0_0 = arith.constant 0 : index
    %c0_1 = arith.constant 0 : index
    %c0_2 = arith.constant 0 : index
    %0 = vector.load %arg1[%c0, %c0_0, %c0_1, %c0_2] : memref<1x16x16x4xf32, #tpu.memory_space<vmem>>, vector<1x16x16x4xf32>
    %1 = vector.shape_cast %0 : vector<1x16x16x4xf32> to vector<16x16x4xf32>
    %2 = arith.truncf %1 : vector<16x16x4xf32> to vector<16x16x4xbf16>
    %cst = arith.constant 0.000000e+00 : bf16
    %3 = vector.broadcast %cst : bf16 to vector<1x16x4xbf16>
    %cst_3 = arith.constant 0.000000e+00 : bf16
    %4 = vector.broadcast %cst_3 : bf16 to vector<18x1x4xbf16>
    %5 = tpu.concatenate %3, %2, %3 in 0 : vector<1x16x4xbf16>, vector<16x16x4xbf16>, vector<1x16x4xbf16> -> vector<18x16x4xbf16>
    %6 = tpu.concatenate %4, %5, %4 in 1 : vector<18x1x4xbf16>, vector<18x16x4xbf16>, vector<18x1x4xbf16> -> vector<18x18x4xbf16>
    %cst_4 = arith.constant 0.000000e+00 : f32
    %7 = vector.broadcast %cst_4 : f32 to vector<256x4xf32>
    %8 = vector.extract_strided_slice %6 {offsets = [0, 0, 0], sizes = [16, 16, 4], strides = [1, 1, 1]} : vector<18x18x4xbf16> to vector<16x16x4xbf16>
    %9 = vector.shape_cast %8 : vector<16x16x4xbf16> to vector<256x4xbf16>
    %c0_5 = arith.constant 0 : index
    %c0_6 = arith.constant 0 : index
    %c0_7 = arith.constant 0 : index
    %10 = vector.load %arg2[%c0_5, %c0_6, %c0_7] : memref<9x4x4xbf16, #tpu.memory_space<vmem>>, vector<1x4x4xbf16>
    %11 = vector.shape_cast %10 : vector<1x4x4xbf16> to vector<4x4xbf16>
    %cst_8 = arith.constant dense<0.000000e+00> : vector<256x4xf32>
    %12 = tpu.matmul %9, %11, %cst_8 {dimension_numbers = #tpu.dot_dimension_numbers<[1], [0], [0], [1], [0, 0, 1, 1], [], []>} : vector<256x4xbf16>, vector<4x4xbf16>, vector<256x4xf32> -> vector<256x4xf32>
    %13 = arith.addf %7, %12 : vector<256x4xf32>
    %14 = vector.extract_strided_slice %6 {offsets = [0, 1, 0], sizes = [16, 16, 4], strides = [1, 1, 1]} : vector<18x18x4xbf16> to vector<16x16x4xbf16>
    %15 = vector.shape_cast %14 : vector<16x16x4xbf16> to vector<256x4xbf16>
    %c1 = arith.constant 1 : index
    %c0_9 = arith.constant 0 : index
    %c0_10 = arith.constant 0 : index
    %16 = vector.load %arg2[%c1, %c0_9, %c0_10] : memref<9x4x4xbf16, #tpu.memory_space<vmem>>, vector<1x4x4xbf16>
    %17 = vector.shape_cast %16 : vector<1x4x4xbf16> to vector<4x4xbf16>
    %cst_11 = arith.constant dense<0.000000e+00> : vector<256x4xf32>
    %18 = tpu.matmul %15, %17, %cst_11 {dimension_numbers = #tpu.dot_dimension_numbers<[1], [0], [0], [1], [0, 0, 1, 1], [], []>} : vector<256x4xbf16>, vector<4x4xbf16>, vector<256x4xf32> -> vector<256x4xf32>
    %19 = arith.addf %13, %18 : vector<256x4xf32>
    %20 = vector.extract_strided_slice %6 {offsets = [0, 2, 0], sizes = [16, 16, 4], strides = [1, 1, 1]} : vector<18x18x4xbf16> to vector<16x16x4xbf16>
    %21 = vector.shape_cast %20 : vector<16x16x4xbf16> to vector<256x4xbf16>
    %c2 = arith.constant 2 : index
    %c0_12 = arith.constant 0 : index
    %c0_13 = arith.constant 0 : index
    %22 = vector.load %arg2[%c2, %c0_12, %c0_13] : memref<9x4x4xbf16, #tpu.memory_space<vmem>>, vector<1x4x4xbf16>
    %23 = vector.shape_cast %22 : vector<1x4x4xbf16> to vector<4x4xbf16>
    %cst_14 = arith.constant dense<0.000000e+00> : vector<256x4xf32>
    %24 = tpu.matmul %21, %23, %cst_14 {dimension_numbers = #tpu.dot_dimension_numbers<[1], [0], [0], [1], [0, 0, 1, 1], [], []>} : vector<256x4xbf16>, vector<4x4xbf16>, vector<256x4xf32> -> vector<256x4xf32>
    %25 = arith.addf %19, %24 : vector<256x4xf32>
    %26 = vector.extract_strided_slice %6 {offsets = [1, 0, 0], sizes = [16, 16, 4], strides = [1, 1, 1]} : vector<18x18x4xbf16> to vector<16x16x4xbf16>
    %27 = vector.shape_cast %26 : vector<16x16x4xbf16> to vector<256x4xbf16>
    %c3 = arith.constant 3 : index
    %c0_15 = arith.constant 0 : index
    %c0_16 = arith.constant 0 : index
    %28 = vector.load %arg2[%c3, %c0_15, %c0_16] : memref<9x4x4xbf16, #tpu.memory_space<vmem>>, vector<1x4x4xbf16>
    %29 = vector.shape_cast %28 : vector<1x4x4xbf16> to vector<4x4xbf16>
    %cst_17 = arith.constant dense<0.000000e+00> : vector<256x4xf32>
    %30 = tpu.matmul %27, %29, %cst_17 {dimension_numbers = #tpu.dot_dimension_numbers<[1], [0], [0], [1], [0, 0, 1, 1], [], []>} : vector<256x4xbf16>, vector<4x4xbf16>, vector<256x4xf32> -> vector<256x4xf32>
    %31 = arith.addf %25, %30 : vector<256x4xf32>
    %32 = vector.extract_strided_slice %6 {offsets = [1, 1, 0], sizes = [16, 16, 4], strides = [1, 1, 1]} : vector<18x18x4xbf16> to vector<16x16x4xbf16>
    %33 = vector.shape_cast %32 : vector<16x16x4xbf16> to vector<256x4xbf16>
    %c4 = arith.constant 4 : index
    %c0_18 = arith.constant 0 : index
    %c0_19 = arith.constant 0 : index
    %34 = vector.load %arg2[%c4, %c0_18, %c0_19] : memref<9x4x4xbf16, #tpu.memory_space<vmem>>, vector<1x4x4xbf16>
    %35 = vector.shape_cast %34 : vector<1x4x4xbf16> to vector<4x4xbf16>
    %cst_20 = arith.constant dense<0.000000e+00> : vector<256x4xf32>
    %36 = tpu.matmul %33, %35, %cst_20 {dimension_numbers = #tpu.dot_dimension_numbers<[1], [0], [0], [1], [0, 0, 1, 1], [], []>} : vector<256x4xbf16>, vector<4x4xbf16>, vector<256x4xf32> -> vector<256x4xf32>
    %37 = arith.addf %31, %36 : vector<256x4xf32>
    %38 = vector.extract_strided_slice %6 {offsets = [1, 2, 0], sizes = [16, 16, 4], strides = [1, 1, 1]} : vector<18x18x4xbf16> to vector<16x16x4xbf16>
    %39 = vector.shape_cast %38 : vector<16x16x4xbf16> to vector<256x4xbf16>
    %c5 = arith.constant 5 : index
    %c0_21 = arith.constant 0 : index
    %c0_22 = arith.constant 0 : index
    %40 = vector.load %arg2[%c5, %c0_21, %c0_22] : memref<9x4x4xbf16, #tpu.memory_space<vmem>>, vector<1x4x4xbf16>
    %41 = vector.shape_cast %40 : vector<1x4x4xbf16> to vector<4x4xbf16>
    %cst_23 = arith.constant dense<0.000000e+00> : vector<256x4xf32>
    %42 = tpu.matmul %39, %41, %cst_23 {dimension_numbers = #tpu.dot_dimension_numbers<[1], [0], [0], [1], [0, 0, 1, 1], [], []>} : vector<256x4xbf16>, vector<4x4xbf16>, vector<256x4xf32> -> vector<256x4xf32>
    %43 = arith.addf %37, %42 : vector<256x4xf32>
    %44 = vector.extract_strided_slice %6 {offsets = [2, 0, 0], sizes = [16, 16, 4], strides = [1, 1, 1]} : vector<18x18x4xbf16> to vector<16x16x4xbf16>
    %45 = vector.shape_cast %44 : vector<16x16x4xbf16> to vector<256x4xbf16>
    %c6 = arith.constant 6 : index
    %c0_24 = arith.constant 0 : index
    %c0_25 = arith.constant 0 : index
    %46 = vector.load %arg2[%c6, %c0_24, %c0_25] : memref<9x4x4xbf16, #tpu.memory_space<vmem>>, vector<1x4x4xbf16>
    %47 = vector.shape_cast %46 : vector<1x4x4xbf16> to vector<4x4xbf16>
    %cst_26 = arith.constant dense<0.000000e+00> : vector<256x4xf32>
    %48 = tpu.matmul %45, %47, %cst_26 {dimension_numbers = #tpu.dot_dimension_numbers<[1], [0], [0], [1], [0, 0, 1, 1], [], []>} : vector<256x4xbf16>, vector<4x4xbf16>, vector<256x4xf32> -> vector<256x4xf32>
    %49 = arith.addf %43, %48 : vector<256x4xf32>
    %50 = vector.extract_strided_slice %6 {offsets = [2, 1, 0], sizes = [16, 16, 4], strides = [1, 1, 1]} : vector<18x18x4xbf16> to vector<16x16x4xbf16>
    %51 = vector.shape_cast %50 : vector<16x16x4xbf16> to vector<256x4xbf16>
    %c7 = arith.constant 7 : index
    %c0_27 = arith.constant 0 : index
    %c0_28 = arith.constant 0 : index
    %52 = vector.load %arg2[%c7, %c0_27, %c0_28] : memref<9x4x4xbf16, #tpu.memory_space<vmem>>, vector<1x4x4xbf16>
    %53 = vector.shape_cast %52 : vector<1x4x4xbf16> to vector<4x4xbf16>
    %cst_29 = arith.constant dense<0.000000e+00> : vector<256x4xf32>
    %54 = tpu.matmul %51, %53, %cst_29 {dimension_numbers = #tpu.dot_dimension_numbers<[1], [0], [0], [1], [0, 0, 1, 1], [], []>} : vector<256x4xbf16>, vector<4x4xbf16>, vector<256x4xf32> -> vector<256x4xf32>
    %55 = arith.addf %49, %54 : vector<256x4xf32>
    %56 = vector.extract_strided_slice %6 {offsets = [2, 2, 0], sizes = [16, 16, 4], strides = [1, 1, 1]} : vector<18x18x4xbf16> to vector<16x16x4xbf16>
    %57 = vector.shape_cast %56 : vector<16x16x4xbf16> to vector<256x4xbf16>
    %c8 = arith.constant 8 : index
    %c0_30 = arith.constant 0 : index
    %c0_31 = arith.constant 0 : index
    %58 = vector.load %arg2[%c8, %c0_30, %c0_31] : memref<9x4x4xbf16, #tpu.memory_space<vmem>>, vector<1x4x4xbf16>
    %59 = vector.shape_cast %58 : vector<1x4x4xbf16> to vector<4x4xbf16>
    %cst_32 = arith.constant dense<0.000000e+00> : vector<256x4xf32>
    %60 = tpu.matmul %57, %59, %cst_32 {dimension_numbers = #tpu.dot_dimension_numbers<[1], [0], [0], [1], [0, 0, 1, 1], [], []>} : vector<256x4xbf16>, vector<4x4xbf16>, vector<256x4xf32> -> vector<256x4xf32>
    %61 = arith.addf %55, %60 : vector<256x4xf32>
    %62 = vector.shape_cast %61 : vector<256x4xf32> to vector<16x16x4xf32>
    %63 = arith.truncf %62 : vector<16x16x4xf32> to vector<16x16x4xbf16>
    %c0_33 = arith.constant 0 : index
    %c0_34 = arith.constant 0 : index
    %c0_35 = arith.constant 0 : index
    %c0_36 = arith.constant 0 : index
    %64 = vector.load %arg3[%c0_33, %c0_34, %c0_35, %c0_36] : memref<1x16x16x4xbf16, #tpu.memory_space<vmem>>, vector<1x16x16x4xbf16>
    %65 = vector.shape_cast %64 : vector<1x16x16x4xbf16> to vector<16x16x4xbf16>
    %66 = vector.shape_cast %63 : vector<16x16x4xbf16> to vector<1x16x16x4xbf16>
    tpu.vector_store %arg3[%c0_33, %c0_34, %c0_35, %c0_36], %66 {strides = array<i32>} : memref<1x16x16x4xbf16, #tpu.memory_space<vmem>>, vector<1x16x16x4xbf16>,
    %cst_37 = arith.constant dense<0.000000e+00> : vector<4xf32>
    %67 = vector.multi_reduction <add>, %61, %cst_37 [0] : vector<256x4xf32> to vector<4xf32>
    %68 = vector.shape_cast %67 : vector<4xf32> to vector<1x4xf32>
    %c0_38 = arith.constant 0 : index
    %c0_39 = arith.constant 0 : index
    %c0_40 = arith.constant 0 : index
    %69 = vector.load %arg4[%c0_38, %c0_39, %c0_40] : memref<1x2x4xf32, #tpu.memory_space<vmem>>, vector<1x1x4xf32>
    %70 = vector.shape_cast %69 : vector<1x1x4xf32> to vector<1x4xf32>
    %71 = vector.shape_cast %68 : vector<1x4xf32> to vector<1x1x4xf32>
    tpu.vector_store %arg4[%c0_38, %c0_39, %c0_40], %71 {strides = array<i32>} : memref<1x2x4xf32, #tpu.memory_space<vmem>>, vector<1x1x4xf32>,
    %72 = arith.mulf %61, %61 : vector<256x4xf32>
    %cst_41 = arith.constant dense<0.000000e+00> : vector<4xf32>
    %73 = vector.multi_reduction <add>, %72, %cst_41 [0] : vector<256x4xf32> to vector<4xf32>
    %74 = vector.shape_cast %73 : vector<4xf32> to vector<1x4xf32>
    %c0_42 = arith.constant 0 : index
    %c1_43 = arith.constant 1 : index
    %c0_44 = arith.constant 0 : index
    %75 = vector.load %arg4[%c0_42, %c1_43, %c0_44] : memref<1x2x4xf32, #tpu.memory_space<vmem>>, vector<1x1x4xf32>
    %76 = vector.shape_cast %75 : vector<1x1x4xf32> to vector<1x4xf32>
    %77 = vector.shape_cast %74 : vector<1x4xf32> to vector<1x1x4xf32>
    tpu.vector_store %arg4[%c0_42, %c1_43, %c0_44], %77 {strides = array<i32>} : memref<1x2x4xf32, #tpu.memory_space<vmem>>, vector<1x1x4xf32>,
    return
  }
  func.func @transform_0(%arg0: i32) -> (i32, i32, i32, i32) {
    %c0_i32 = arith.constant 0 : i32
    %c0_i32_0 = arith.constant 0 : i32
    %c0_i32_1 = arith.constant 0 : i32
    %c0_i32_2 = arith.constant 0 : i32
    return %arg0, %c0_i32, %c0_i32_0, %c0_i32_1 : i32, i32, i32, i32
  }
  func.func @transform_1(%arg0: i32) -> (i32, i32, i32) {
    %c0_i32 = arith.constant 0 : i32
    %c0_i32_0 = arith.constant 0 : i32
    %c0_i32_1 = arith.constant 0 : i32
    %c0_i32_2 = arith.constant 0 : i32
    return %c0_i32, %c0_i32_0, %c0_i32_1 : i32, i32, i32
  }
  func.func @transform_2(%arg0: i32) -> (i32, i32, i32, i32) {
    %c0_i32 = arith.constant 0 : i32
    %c0_i32_0 = arith.constant 0 : i32
    %c0_i32_1 = arith.constant 0 : i32
    %c0_i32_2 = arith.constant 0 : i32
    return %arg0, %c0_i32, %c0_i32_0, %c0_i32_1 : i32, i32, i32, i32
  }
  func.func @transform_3(%arg0: i32) -> (i32, i32, i32) {
    %c0_i32 = arith.constant 0 : i32
    %c0_i32_0 = arith.constant 0 : i32
    %c0_i32_1 = arith.constant 0 : i32
    return %arg0, %c0_i32, %c0_i32_0 : i32, i32, i32
  }
}

</mosaic_0001>

<llo_original>
// kernel: tpu_custom_call.1
$region0: #{tpu_custom_call.1}
  #allocation0 [shape = 'u32[]', space=smem, size = 0x4, offset = 0x4, fixed_abs, tag = 'smem constant byte address 0x4 - core index']
  #allocation1 [shape = 'u32[144,128]{1,0:T(1,128)}', space=vmem, size = 0x12000, scoped, tag = 'internal scratch']
  %s0 = inlined_call_operand.vmem [shape: f32[2,16,16,4], index: 0, kind: input, shape index: {}]
  %s1 = inlined_call_operand.vmem [shape: bf16[9,4,4], index: 1, kind: input, shape index: {}]
  %s2 = inlined_call_operand.vmem [shape: bf16[2,16,16,4], index: 2, kind: output, shape index: {0}]
  %s3 = inlined_call_operand.hbm [shape: f32[2,2,4], index: 3, kind: output, shape index: {1}]
  %4 = xla_tuple %s2, %s3
  %s5 = sld [smem:[#allocation0]]
  $region49: #{tpu_custom_call.1} parent=0
    _
  %s7 = ssub.s32 1, %s5
  %s8 = scalar_select 0, %s7, %s5
  $region1: #{tpu_custom_call.1} parent=0
    #allocation2 [shape = 'u8[2048]{0}', space=vmem, size = 0x800, scoped, tag = 'output window, operand 1']
    #allocation3 [shape = 's32[2]{0}', space=sflag, size = 0x8, scoped, tag = 'scoped memory for tpu_custom_call.1']
    %9 = vsyncpa [#allocation3], 0
    %s10 = scalar_lea.sflag [#allocation3], 1
    %11 = vsyncpa %s10, 0
    loop: start=0, step=1, limit=4
    $region2: #{tpu_custom_call.1} parent=1 // loop_pre_header
      _
    $region3: #{tpu_custom_call.1} parent=1 // loop_header
      %s13 = sphi 0, %s17
      %p14 = scmp.ge.s32.totalorder %s13, 4
      %s23 = sphi 0, %s25
      %s26 = sphi 0, %s23
      %s27 = sphi 0, %s26
      %s43 = sphi 0, %s27
      %s47 = sphi 0, %s47
      %s49 = sphi 0, %s47
      %s50 = sphi 0, %s49
      %s64 = sphi 0, %s50
      %s70 = sphi 0, %s72
      %s73 = sphi 0, %s70
      %s74 = sphi 0, %s73
      %s90 = sphi 0, %s74
      %s96 = sphi 0, %s98
      %s99 = sphi 0, %s96
      %s100 = sphi 0, %s99
      %s116 = sphi 0, %s100
    $region4: #{tpu_custom_call.1} parent=1 // loop_header_branch
      %16 = sbr.rel (%p14) target = $region8
    $region5: #{tpu_custom_call.1} parent=1 // loop_body
      %s18 = ssub.s32 %s13, 1
      %s19 = ssub.s32 %s13, 2
      %s20 = sadd.s32 %s13, 1
      %s21 = ssub.s32 %s13, %s20
      %p22 = scmp.eq.s32.totalorder %s21, 0
      %s24 = sadd.s32 %s23, 1
      %s25 = scalar_select %p22, %s23, %s24
      %p28 = pneg %p22
      %p29 = scmp.eq.s32.totalorder %s13, 1
      %p30 = por %p28, %p29
      %p31 = scmp.ne.s32.totalorder %s23, %s26
      %p32 = scmp.eq.s32.totalorder %s13, 0
      %p33 = por %p31, %p32
      %p34 = scmp.ne.s32.totalorder %s23, %s26
      %p35 = scmp.eq.s32.totalorder %s18, 1
      %p36 = por %p34, %p35
      %p37 = scmp.ne.s32.totalorder %s26, %s27
      %p38 = scmp.eq.s32.totalorder %s18, 0
      %p39 = por %p37, %p38
      %p40 = scmp.ne.s32.totalorder %s26, %s27
      %p41 = scmp.eq.s32.totalorder %s19, 1
      %p42 = por %p40, %p41
      %p44 = scmp.ne.s32.totalorder %s27, %s43
      %p45 = scmp.eq.s32.totalorder %s19, 0
      %p46 = por %p44, %p45
      %s48 = sadd.s32 %s47, 1
      %p51 = scmp.eq.s32.totalorder %s13, 1
      %p52 = scmp.ne.s32.totalorder %s47, %s49
      %p53 = scmp.eq.s32.totalorder %s13, 0
      %p54 = por %p52, %p53
      %p55 = scmp.ne.s32.totalorder %s47, %s49
      %p56 = scmp.eq.s32.totalorder %s18, 1
      %p57 = por %p55, %p56
      %p58 = scmp.ne.s32.totalorder %s49, %s50
      %p59 = scmp.eq.s32.totalorder %s18, 0
      %p60 = por %p58, %p59
      %p61 = scmp.ne.s32.totalorder %s49, %s50
      %p62 = scmp.eq.s32.totalorder %s19, 1
      %p63 = por %p61, %p62
      %p65 = scmp.ne.s32.totalorder %s50, %s64
      %p66 = scmp.eq.s32.totalorder %s19, 0
      %p67 = por %p65, %p66
      %s68 = ssub.s32 %s13, %s20
      %p69 = scmp.eq.s32.totalorder %s68, 0
      %s71 = sadd.s32 %s70, 1
      %s72 = scalar_select %p69, %s70, %s71
      %p75 = pneg %p69
      %p76 = scmp.eq.s32.totalorder %s13, 1
      %p77 = por %p75, %p76
      %p78 = scmp.ne.s32.totalorder %s70, %s73
      %p79 = scmp.eq.s32.totalorder %s13, 0
      %p80 = por %p78, %p79
      %p81 = scmp.ne.s32.totalorder %s70, %s73
      %p82 = scmp.eq.s32.totalorder %s18, 1
      %p83 = por %p81, %p82
      %p84 = scmp.ne.s32.totalorder %s73, %s74
      %p85 = scmp.eq.s32.totalorder %s18, 0
      %p86 = por %p84, %p85
      %p87 = scmp.ne.s32.totalorder %s73, %s74
      %p88 = scmp.eq.s32.totalorder %s19, 1
      %p89 = por %p87, %p88
      %p91 = scmp.ne.s32.totalorder %s74, %s90
      %p92 = scmp.eq.s32.totalorder %s19, 0
      %p93 = por %p91, %p92
      %s94 = ssub.s32 %s13, %s20
      %p95 = scmp.eq.s32.totalorder %s94, 0
      %s97 = sadd.s32 %s96, 1
      %s98 = scalar_select %p95, %s96, %s97
      %p101 = pneg %p95
      %p102 = scmp.eq.s32.totalorder %s13, 1
      %p103 = por %p101, %p102
      %p104 = scmp.ne.s32.totalorder %s96, %s99
      %p105 = scmp.eq.s32.totalorder %s13, 0
      %p106 = por %p104, %p105
      %p107 = scmp.ne.s32.totalorder %s96, %s99
      %p108 = scmp.eq.s32.totalorder %s18, 1
      %p109 = por %p107, %p108
      %p110 = scmp.ne.s32.totalorder %s99, %s100
      %p111 = scmp.eq.s32.totalorder %s18, 0
      %p112 = por %p110, %p111
      %p113 = scmp.ne.s32.totalorder %s99, %s100
      %p114 = scmp.eq.s32.totalorder %s19, 1
      %p115 = por %p113, %p114
      %p117 = scmp.ne.s32.totalorder %s100, %s116
      %p118 = scmp.eq.s32.totalorder %s19, 0
      %p119 = por %p117, %p118
      %p120 = scmp.le.s32.totalorder 1, %s13
      %p121 = scmp.lt.s32.totalorder %s13, 3
      %p122 = pnand %p120, %p121
      %p123 = pneg %p122
      // Predicated region
      $region9: #{tpu_custom_call.1} parent=5 // pred_check
        _
      $region10: #{tpu_custom_call.1} parent=5 // pred_check_branch
        %125 = sbr.rel (%p122) target = $region12
      $region11: #{tpu_custom_call.1} parent=5 // pred_region
        %s126 = ssub.s32 %s13, 1
        // Predicated region
        $region13: #{tpu_custom_call.1} parent=11 // pred_check
          %p127 = pneg %p60
        $region14: #{tpu_custom_call.1} parent=11 // pred_check_branch
          %129 = sbr.rel (%p127) target = $region16
        $region15: #{tpu_custom_call.1} parent=11 // pred_region
          _
        $region16: #{tpu_custom_call.1} parent=11 // pred_fallthru
          _
      $region12: #{tpu_custom_call.1} parent=5 // pred_fallthru
        _
      %p130 = scmp.lt.s32.totalorder %s13, 2
      // Predicated region
      $region17: #{tpu_custom_call.1} parent=5 // pred_check
        %p131 = pneg %p130
      $region18: #{tpu_custom_call.1} parent=5 // pred_check_branch
        %133 = sbr.rel (%p131) target = $region20
      $region19: #{tpu_custom_call.1} parent=5 // pred_region
        // Predicated region
        $region21: #{tpu_custom_call.1} parent=19 // pred_check
          %p134 = pneg %p33
        $region22: #{tpu_custom_call.1} parent=19 // pred_check_branch
          %136 = sbr.rel (%p134) target = $region24
        $region23: #{tpu_custom_call.1} parent=19 // pred_region
          %p137 = scmp.lt.s32.totalorder %s13, 1
          %s138 = scalar_select %p137, %s13, 1
          %s139 = smul.addr %s138, 32
          %s140 = smul.addr %s139, 8
          %s141 = scalar_lea.vmem %s0, %s140
        $region24: #{tpu_custom_call.1} parent=19 // pred_fallthru
          _
      $region20: #{tpu_custom_call.1} parent=5 // pred_fallthru
        _
      %p142 = scmp.le.s32.totalorder 1, %s13
      %p143 = scmp.lt.s32.totalorder %s13, 3
      %p144 = pnand %p142, %p143
      %p145 = pneg %p144
      // Predicated region
      $region25: #{tpu_custom_call.1} parent=5 // pred_check
        _
      $region26: #{tpu_custom_call.1} parent=5 // pred_check_branch
        %147 = sbr.rel (%p144) target = $region28
      $region27: #{tpu_custom_call.1} parent=5 // pred_region
        %s148 = ssub.s32 %s13, 1
        %p149 = scmp.lt.s32.totalorder %s18, 1
        %s150 = scalar_select %p149, %s18, 1
        %s151 = smul.addr %s150, 32
        %s152 = smul.addr %s151, 8
        %s153 = scalar_lea.vmem %s0, %s152
        %p154 = pneg %p39
        %p155 = pneg %p36
        %p156 = pneg %p60
        %p157 = pneg %p57
        %p158 = pneg %p86
        %p159 = pneg %p83
        %p160 = scmp.lt.s32.totalorder %s18, 1
        %s161 = scalar_select %p160, %s18, 1
        %s162 = smul.addr %s161, 32
        %s163 = smul.addr %s162, 4
        %s164 = scalar_lea.vmem %s2, %s163
        %p165 = pneg %p112
        %p166 = pneg %p109
        %s167 = sand.u32 %s99, 1
        %s168 = scalar_lea.sflag [#allocation3], %s167
        %s169 = sand.u32 %s99, 1
        %s170 = smul.addr %s169, 2
        %s171 = scalar_lea.vmem [#allocation2], %s170
        %p172 = scmp.lt.s32.totalorder %s18, 1
        %s173 = scalar_select %p172, %s18, 1
        %s174 = smul.addr %s173, 32
        %s175 = smul.addr %s174, 8
        %s176 = scalar_lea.vmem %s0, %s175
        %p177 = scmp.lt.s32.totalorder %s18, 1
        %s178 = scalar_select %p177, %s18, 1
        %s179 = smul.addr %s178, 32
        %s180 = smul.addr %s179, 4
        %s181 = scalar_lea.vmem %s2, %s180
        %v183 = vld [vmem:[%s176] sm:$0xff]
        %v184 = vld [vmem:[%s176 + $0x8] sm:$0xff]
        %v185 = vld [vmem:[%s176 + $0x10] sm:$0xff]
        %v186 = vld [vmem:[%s176 + $0x18] sm:$0xff]
        %v187 = vld [vmem:[%s176 + $0x20] sm:$0xff]
        %v188 = vld [vmem:[%s176 + $0x28] sm:$0xff]
        %v189 = vld [vmem:[%s176 + $0x30] sm:$0xff]
        %v190 = vld [vmem:[%s176 + $0x38] sm:$0xff]
        %v191 = vld [vmem:[%s176 + $0x40] sm:$0xff]
        %v192 = vld [vmem:[%s176 + $0x48] sm:$0xff]
        %v193 = vld [vmem:[%s176 + $0x50] sm:$0xff]
        %v194 = vld [vmem:[%s176 + $0x58] sm:$0xff]
        %v195 = vld [vmem:[%s176 + $0x60] sm:$0xff]
        %v196 = vld [vmem:[%s176 + $0x68] sm:$0xff]
        %v197 = vld [vmem:[%s176 + $0x70] sm:$0xff]
        %v198 = vld [vmem:[%s176 + $0x78] sm:$0xff]
        %v199 = vld [vmem:[%s176 + $0x80] sm:$0xff]
        %v200 = vld [vmem:[%s176 + $0x88] sm:$0xff]
        %v201 = vld [vmem:[%s176 + $0x90] sm:$0xff]
        %v202 = vld [vmem:[%s176 + $0x98] sm:$0xff]
        %v203 = vld [vmem:[%s176 + $0xa0] sm:$0xff]
        %v204 = vld [vmem:[%s176 + $0xa8] sm:$0xff]
        %v205 = vld [vmem:[%s176 + $0xb0] sm:$0xff]
        %v206 = vld [vmem:[%s176 + $0xb8] sm:$0xff]
        %v207 = vld [vmem:[%s176 + $0xc0] sm:$0xff]
        %v208 = vld [vmem:[%s176 + $0xc8] sm:$0xff]
        %v209 = vld [vmem:[%s176 + $0xd0] sm:$0xff]
        %v210 = vld [vmem:[%s176 + $0xd8] sm:$0xff]
        %v211 = vld [vmem:[%s176 + $0xe0] sm:$0xff]
        %v212 = vld [vmem:[%s176 + $0xe8] sm:$0xff]
        %v213 = vld [vmem:[%s176 + $0xf0] sm:$0xff]
        %v214 = vld [vmem:[%s176 + $0xf8] sm:$0xff]
        %v215 = vpack.c.bf16 %v184, %v183
        %v216 = vpack.c.bf16 %v186, %v185
        %v217 = vpack.c.bf16 %v188, %v187
        %v218 = vpack.c.bf16 %v190, %v189
        %v219 = vpack.c.bf16 %v192, %v191
        %v220 = vpack.c.bf16 %v194, %v193
        %v221 = vpack.c.bf16 %v196, %v195
        %v222 = vpack.c.bf16 %v198, %v197
        %v223 = vpack.c.bf16 %v200, %v199
        %v224 = vpack.c.bf16 %v202, %v201
        %v225 = vpack.c.bf16 %v204, %v203
        %v226 = vpack.c.bf16 %v206, %v205
        %v227 = vpack.c.bf16 %v208, %v207
        %v228 = vpack.c.bf16 %v210, %v209
        %v229 = vpack.c.bf16 %v212, %v211
        %v230 = vpack.c.bf16 %v214, %v213
        %v232 = vshrl.u32 0, 16
        %v234 = vrot.slane %v232, 7
        %v235 = vshll.u32 0, 16
        %v237 = vor.u32 %v234, %v235
        %v239 = vshrl.u32 %v215, 16
        %v241 = vrot.slane %v239, 7
        %v242 = vshll.u32 %v215, 16
        %v244 = vor.u32 %v241, %v242
        %v246 = vshrl.u32 %v216, 16
        %v248 = vrot.slane %v246, 7
        %v249 = vshll.u32 %v216, 16
        %v251 = vor.u32 %v248, %v249
        %v253 = vshrl.u32 %v217, 16
        %v255 = vrot.slane %v253, 7
        %v256 = vshll.u32 %v217, 16
        %v258 = vor.u32 %v255, %v256
        %v260 = vshrl.u32 %v218, 16
        %v262 = vrot.slane %v260, 7
        %v263 = vshll.u32 %v218, 16
        %v265 = vor.u32 %v262, %v263
        %v267 = vshrl.u32 %v219, 16
        %v269 = vrot.slane %v267, 7
        %v270 = vshll.u32 %v219, 16
        %v272 = vor.u32 %v269, %v270
        %v274 = vshrl.u32 %v220, 16
        %v276 = vrot.slane %v274, 7
        %v277 = vshll.u32 %v220, 16
        %v279 = vor.u32 %v276, %v277
        %v281 = vshrl.u32 %v221, 16
        %v283 = vrot.slane %v281, 7
        %v284 = vshll.u32 %v221, 16
        %v286 = vor.u32 %v283, %v284
        %v288 = vshrl.u32 %v222, 16
        %v290 = vrot.slane %v288, 7
        %v291 = vshll.u32 %v222, 16
        %v293 = vor.u32 %v290, %v291
        %v295 = vshrl.u32 %v223, 16
        %v297 = vrot.slane %v295, 7
        %v298 = vshll.u32 %v223, 16
        %v300 = vor.u32 %v297, %v298
        %v302 = vshrl.u32 %v224, 16
        %v304 = vrot.slane %v302, 7
        %v305 = vshll.u32 %v224, 16
        %v307 = vor.u32 %v304, %v305
        %v309 = vshrl.u32 %v225, 16
        %v311 = vrot.slane %v309, 7
        %v312 = vshll.u32 %v225, 16
        %v314 = vor.u32 %v311, %v312
        %v316 = vshrl.u32 %v226, 16
        %v318 = vrot.slane %v316, 7
        %v319 = vshll.u32 %v226, 16
        %v321 = vor.u32 %v318, %v319
        %v323 = vshrl.u32 %v227, 16
        %v325 = vrot.slane %v323, 7
        %v326 = vshll.u32 %v227, 16
        %v328 = vor.u32 %v325, %v326
        %v330 = vshrl.u32 %v228, 16
        %v332 = vrot.slane %v330, 7
        %v333 = vshll.u32 %v228, 16
        %v335 = vor.u32 %v332, %v333
        %v337 = vshrl.u32 %v229, 16
        %v339 = vrot.slane %v337, 7
        %v340 = vshll.u32 %v229, 16
        %v342 = vor.u32 %v339, %v340
        %v344 = vshrl.u32 %v230, 16
        %v346 = vrot.slane %v344, 7
        %v347 = vshll.u32 %v230, 16
        %v349 = vor.u32 %v346, %v347
        %vm384 = vcmask 1040384
        %vm385 = vsmask.f32 256
        %vm386 = vmand %vm384, %vm385
        %v387 = vsel %vm386, 0, %v237
        %v388 = vsel %vm386, 0, %v244
        %v389 = vsel %vm386, 0, %v251
        %v390 = vsel %vm386, 0, %v258
        %v391 = vsel %vm386, 0, %v265
        %v392 = vsel %vm386, 0, %v272
        %v393 = vsel %vm386, 0, %v279
        %v394 = vsel %vm386, 0, %v286
        %v395 = vsel %vm386, 0, %v293
        %v396 = vsel %vm386, 0, %v300
        %v397 = vsel %vm386, 0, %v307
        %v398 = vsel %vm386, 0, %v314
        %v399 = vsel %vm386, 0, %v321
        %v400 = vsel %vm386, 0, %v328
        %v401 = vsel %vm386, 0, %v335
        %v402 = vsel %vm386, 0, %v342
        %v403 = vsel %vm386, 0, %v349
        %v404 = vsel %vm386, %v234, 0
        %v405 = vsel %vm386, %v241, 0
        %v406 = vsel %vm386, %v248, 0
        %v407 = vsel %vm386, %v255, 0
        %v408 = vsel %vm386, %v262, 0
        %v409 = vsel %vm386, %v269, 0
        %v410 = vsel %vm386, %v276, 0
        %v411 = vsel %vm386, %v283, 0
        %v412 = vsel %vm386, %v290, 0
        %v413 = vsel %vm386, %v297, 0
        %v414 = vsel %vm386, %v304, 0
        %v415 = vsel %vm386, %v311, 0
        %v416 = vsel %vm386, %v318, 0
        %v417 = vsel %vm386, %v325, 0
        %v418 = vsel %vm386, %v332, 0
        %v419 = vsel %vm386, %v339, 0
        %v420 = vsel %vm386, %v346, 0
        %v421 = vld [vmem:[%s1] sm:$0x3]
        %vm422 = vsmask.f32 7424
        %v424 = vshrl.u32 %v387, 16
        %v426 = vshll.u32 %v387, 16
        %v428 = vrot.slane %v426, 1
        %v429 = vor.u32 %v424, %v428
        %v431 = vshll.u32 %v404, 16
        %v433 = vrot.slane %v431, 1
        %v434 = vsel %vm422, %v429, %v433
        %v436 = vshrl.u32 %v388, 16
        %v438 = vshll.u32 %v388, 16
        %v440 = vrot.slane %v438, 1
        %v441 = vor.u32 %v436, %v440
        %v443 = vshll.u32 %v405, 16
        %v445 = vrot.slane %v443, 1
        %v446 = vsel %vm422, %v441, %v445
        %v448 = vshrl.u32 %v389, 16
        %v450 = vshll.u32 %v389, 16
        %v452 = vrot.slane %v450, 1
        %v453 = vor.u32 %v448, %v452
        %v455 = vshll.u32 %v406, 16
        %v457 = vrot.slane %v455, 1
        %v458 = vsel %vm422, %v453, %v457
        %v460 = vshrl.u32 %v390, 16
        %v462 = vshll.u32 %v390, 16
        %v464 = vrot.slane %v462, 1
        %v465 = vor.u32 %v460, %v464
        %v467 = vshll.u32 %v407, 16
        %v469 = vrot.slane %v467, 1
        %v470 = vsel %vm422, %v465, %v469
        %v472 = vshrl.u32 %v391, 16
        %v474 = vshll.u32 %v391, 16
        %v476 = vrot.slane %v474, 1
        %v477 = vor.u32 %v472, %v476
        %v479 = vshll.u32 %v408, 16
        %v481 = vrot.slane %v479, 1
        %v482 = vsel %vm422, %v477, %v481
        %v484 = vshrl.u32 %v392, 16
        %v486 = vshll.u32 %v392, 16
        %v488 = vrot.slane %v486, 1
        %v489 = vor.u32 %v484, %v488
        %v491 = vshll.u32 %v409, 16
        %v493 = vrot.slane %v491, 1
        %v494 = vsel %vm422, %v489, %v493
        %v496 = vshrl.u32 %v393, 16
        %v498 = vshll.u32 %v393, 16
        %v500 = vrot.slane %v498, 1
        %v501 = vor.u32 %v496, %v500
        %v503 = vshll.u32 %v410, 16
        %v505 = vrot.slane %v503, 1
        %v506 = vsel %vm422, %v501, %v505
        %v508 = vshrl.u32 %v394, 16
        %v510 = vshll.u32 %v394, 16
        %v512 = vrot.slane %v510, 1
        %v513 = vor.u32 %v508, %v512
        %v515 = vshll.u32 %v411, 16
        %v517 = vrot.slane %v515, 1
        %v518 = vsel %vm422, %v513, %v517
        %v520 = vshrl.u32 %v395, 16
        %v522 = vshll.u32 %v395, 16
        %v524 = vrot.slane %v522, 1
        %v525 = vor.u32 %v520, %v524
        %v527 = vshll.u32 %v412, 16
        %v529 = vrot.slane %v527, 1
        %v530 = vsel %vm422, %v525, %v529
        %v532 = vshrl.u32 %v396, 16
        %v534 = vshll.u32 %v396, 16
        %v536 = vrot.slane %v534, 1
        %v537 = vor.u32 %v532, %v536
        %v539 = vshll.u32 %v413, 16
        %v541 = vrot.slane %v539, 1
        %v542 = vsel %vm422, %v537, %v541
        %v544 = vshrl.u32 %v397, 16
        %v546 = vshll.u32 %v397, 16
        %v548 = vrot.slane %v546, 1
        %v549 = vor.u32 %v544, %v548
        %v551 = vshll.u32 %v414, 16
        %v553 = vrot.slane %v551, 1
        %v554 = vsel %vm422, %v549, %v553
        %v556 = vshrl.u32 %v398, 16
        %v558 = vshll.u32 %v398, 16
        %v560 = vrot.slane %v558, 1
        %v561 = vor.u32 %v556, %v560
        %v563 = vshll.u32 %v415, 16
        %v565 = vrot.slane %v563, 1
        %v566 = vsel %vm422, %v561, %v565
        %v568 = vshrl.u32 %v399, 16
        %v570 = vshll.u32 %v399, 16
        %v572 = vrot.slane %v570, 1
        %v573 = vor.u32 %v568, %v572
        %v575 = vshll.u32 %v416, 16
        %v577 = vrot.slane %v575, 1
        %v578 = vsel %vm422, %v573, %v577
        %v580 = vshrl.u32 %v400, 16
        %v582 = vshll.u32 %v400, 16
        %v584 = vrot.slane %v582, 1
        %v585 = vor.u32 %v580, %v584
        %v587 = vshll.u32 %v417, 16
        %v589 = vrot.slane %v587, 1
        %v590 = vsel %vm422, %v585, %v589
        %v592 = vshrl.u32 %v401, 16
        %v594 = vshll.u32 %v401, 16
        %v596 = vrot.slane %v594, 1
        %v597 = vor.u32 %v592, %v596
        %v599 = vshll.u32 %v418, 16
        %v601 = vrot.slane %v599, 1
        %v602 = vsel %vm422, %v597, %v601
        %v604 = vshrl.u32 %v402, 16
        %v606 = vshll.u32 %v402, 16
        %v608 = vrot.slane %v606, 1
        %v609 = vor.u32 %v604, %v608
        %v611 = vshll.u32 %v419, 16
        %v613 = vrot.slane %v611, 1
        %v614 = vsel %vm422, %v609, %v613
        %s615 = scalar_lea.vmem %s1, 2
        %v616 = vld [vmem:[%s615] sm:$0x3]
        %vm617 = vcmask 31744
        %v619 = vsel %vm617, %v434, 0
        %v622 = vsel %vm617, %v446, 0
        %v625 = vsel %vm617, %v458, 0
        %v628 = vsel %vm617, %v470, 0
        %v631 = vsel %vm617, %v482, 0
        %v634 = vsel %vm617, %v494, 0
        %v637 = vsel %vm617, %v506, 0
        %v640 = vsel %vm617, %v518, 0
        %v643 = vsel %vm617, %v530, 0
        %v646 = vsel %vm617, %v542, 0
        %v649 = vsel %vm617, %v554, 0
        %v652 = vsel %vm617, %v566, 0
        %v655 = vsel %vm617, %v578, 0
        %v658 = vsel %vm617, %v590, 0
        %v661 = vsel %vm617, %v602, 0
        %v664 = vsel %vm617, %v614, 0
        %vm666 = vcmask 1041408
        %v668 = vsel %vm666, %v616, 0
        %670 = vmatprep.subr.bf16.mxu0 0
        %671 = vmatpush1.bf16.msra.mxu0 0
        %672 = vmatprep.subr.bf16.mxu0 0
        %673 = vmatpush1.bf16.msra.mxu0 0
        %674 = vmatprep.subr.bf16.mxu0 0
        %675 = vmatpush1.bf16.msra.mxu0 0
        %676 = vmatprep.subr.bf16.mxu0 0
        %677 = vmatpush1.bf16.msra.mxu0 0
        %678 = vmatprep.subr.bf16.mxu0 0
        %679 = vmatpush1.bf16.msra.mxu0 0
        %680 = vmatprep.subr.bf16.mxu0 0
        %681 = vmatpush1.bf16.msra.mxu0 0
        %682 = vmatprep.subr.bf16.mxu0 0
        %683 = vmatpush1.bf16.msra.mxu0 0
        %684 = vmatprep.subr.bf16.mxu0 0
        %685 = vmatpush1.bf16.msra.mxu0 %v668
        %686 = vmatprep.subr.bf16.mxu0 0
        %687 = vmatpush2.bf16.msra.mxu0 0
        %688 = vmatprep.subr.bf16.mxu0 0
        %689 = vmatpush2.bf16.msra.mxu0 0
        %690 = vmatprep.subr.bf16.mxu0 0
        %691 = vmatpush2.bf16.msra.mxu0 0
        %692 = vmatprep.subr.bf16.mxu0 0
        %693 = vmatpush2.bf16.msra.mxu0 0
        %694 = vmatprep.subr.bf16.mxu0 0
        %695 = vmatpush2.bf16.msra.mxu0 0
        %696 = vmatprep.subr.bf16.mxu0 0
        %697 = vmatpush2.bf16.msra.mxu0 0
        %698 = vmatprep.subr.bf16.mxu0 0
        %699 = vmatpush2.bf16.msra.mxu0 0
        %700 = vmatprep.subr.bf16.mxu0 0
        %701 = vmatpush2.bf16.msra.mxu0 0
        %702 = vmatprep.mubr.bf16.mxu0 0
        %703 = vmatmul.mubr.bf16.gmra.mxu0 %v619
        %v704 = vpop.f32.mrf.mxu0
        %v705 = vadd.f32 0.0, %v704
        %v706 = vpop.f32.mrf.mxu0
        %v707 = vpop.f32.mrf.mxu0
        %v708 = vadd.f32 0.0, %v707
        %v709 = vpop.f32.mrf.mxu0
        %710 = vmatprep.mubr.bf16.mxu0 0
        %711 = vmatmul.mubr.bf16.gmra.mxu0 %v622
        %v712 = vpop.f32.mrf.mxu0
        %v713 = vadd.f32 0.0, %v712
        %v714 = vpop.f32.mrf.mxu0
        %v715 = vpop.f32.mrf.mxu0
        %v716 = vadd.f32 0.0, %v715
        %v717 = vpop.f32.mrf.mxu0
        %718 = vmatprep.mubr.bf16.mxu0 0
        %719 = vmatmul.mubr.bf16.gmra.mxu0 %v625
        %v720 = vpop.f32.mrf.mxu0
        %v721 = vadd.f32 0.0, %v720
        %v722 = vpop.f32.mrf.mxu0
        %v723 = vpop.f32.mrf.mxu0
        %v724 = vadd.f32 0.0, %v723
        %v725 = vpop.f32.mrf.mxu0
        %726 = vmatprep.mubr.bf16.mxu0 0
        %727 = vmatmul.mubr.bf16.gmra.mxu0 %v628
        %v728 = vpop.f32.mrf.mxu0
        %v729 = vadd.f32 0.0, %v728
        %v730 = vpop.f32.mrf.mxu0
        %v731 = vpop.f32.mrf.mxu0
        %v732 = vadd.f32 0.0, %v731
        %v733 = vpop.f32.mrf.mxu0
        %734 = vmatprep.mubr.bf16.mxu0 0
        %735 = vmatmul.mubr.bf16.gmra.mxu0 %v631
        %v736 = vpop.f32.mrf.mxu0
        %v737 = vadd.f32 0.0, %v736
        %v738 = vpop.f32.mrf.mxu0
        %v739 = vpop.f32.mrf.mxu0
        %v740 = vadd.f32 0.0, %v739
        %v741 = vpop.f32.mrf.mxu0
        %742 = vmatprep.mubr.bf16.mxu0 0
        %743 = vmatmul.mubr.bf16.gmra.mxu0 %v634
        %v744 = vpop.f32.mrf.mxu0
        %v745 = vadd.f32 0.0, %v744
        %v746 = vpop.f32.mrf.mxu0
        %v747 = vpop.f32.mrf.mxu0
        %v748 = vadd.f32 0.0, %v747
        %v749 = vpop.f32.mrf.mxu0
        %750 = vmatprep.mubr.bf16.mxu0 0
        %751 = vmatmul.mubr.bf16.gmra.mxu0 %v637
        %v752 = vpop.f32.mrf.mxu0
        %v753 = vadd.f32 0.0, %v752
        %v754 = vpop.f32.mrf.mxu0
        %v755 = vpop.f32.mrf.mxu0
        %v756 = vadd.f32 0.0, %v755
        %v757 = vpop.f32.mrf.mxu0
        %758 = vmatprep.mubr.bf16.mxu0 0
        %759 = vmatmul.mubr.bf16.gmra.mxu0 %v640
        %v760 = vpop.f32.mrf.mxu0
        %v761 = vadd.f32 0.0, %v760
        %v762 = vpop.f32.mrf.mxu0
        %v763 = vpop.f32.mrf.mxu0
        %v764 = vadd.f32 0.0, %v763
        %v765 = vpop.f32.mrf.mxu0
        %766 = vmatprep.mubr.bf16.mxu0 0
        %767 = vmatmul.mubr.bf16.gmra.mxu0 %v643
        %v768 = vpop.f32.mrf.mxu0
        %v769 = vadd.f32 0.0, %v768
        %v770 = vpop.f32.mrf.mxu0
        %v771 = vpop.f32.mrf.mxu0
        %v772 = vadd.f32 0.0, %v771
        %v773 = vpop.f32.mrf.mxu0
        %774 = vmatprep.mubr.bf16.mxu0 0
        %775 = vmatmul.mubr.bf16.gmra.mxu0 %v646
        %v776 = vpop.f32.mrf.mxu0
        %v777 = vadd.f32 0.0, %v776
        %v778 = vpop.f32.mrf.mxu0
        %v779 = vpop.f32.mrf.mxu0
        %v780 = vadd.f32 0.0, %v779
        %v781 = vpop.f32.mrf.mxu0
        %782 = vmatprep.mubr.bf16.mxu0 0
        %783 = vmatmul.mubr.bf16.gmra.mxu0 %v649
        %v784 = vpop.f32.mrf.mxu0
        %v785 = vadd.f32 0.0, %v784
        %v786 = vpop.f32.mrf.mxu0
        %v787 = vpop.f32.mrf.mxu0
        %v788 = vadd.f32 0.0, %v787
        %v789 = vpop.f32.mrf.mxu0
        %790 = vmatprep.mubr.bf16.mxu0 0
        %791 = vmatmul.mubr.bf16.gmra.mxu0 %v652
        %v792 = vpop.f32.mrf.mxu0
        %v793 = vadd.f32 0.0, %v792
        %v794 = vpop.f32.mrf.mxu0
        %v795 = vpop.f32.mrf.mxu0
        %v796 = vadd.f32 0.0, %v795
        %v797 = vpop.f32.mrf.mxu0
        %798 = vmatprep.mubr.bf16.mxu0 0
        %799 = vmatmul.mubr.bf16.gmra.mxu0 %v655
        %v800 = vpop.f32.mrf.mxu0
        %v801 = vadd.f32 0.0, %v800
        %v802 = vpop.f32.mrf.mxu0
        %v803 = vpop.f32.mrf.mxu0
        %v804 = vadd.f32 0.0, %v803
        %v805 = vpop.f32.mrf.mxu0
        %806 = vmatprep.mubr.bf16.mxu0 0
        %807 = vmatmul.mubr.bf16.gmra.mxu0 %v658
        %v808 = vpop.f32.mrf.mxu0
        %v809 = vadd.f32 0.0, %v808
        %v810 = vpop.f32.mrf.mxu0
        %v811 = vpop.f32.mrf.mxu0
        %v812 = vadd.f32 0.0, %v811
        %v813 = vpop.f32.mrf.mxu0
        %814 = vmatprep.mubr.bf16.mxu0 0
        %815 = vmatmul.mubr.bf16.gmra.mxu0 %v661
        %v816 = vpop.f32.mrf.mxu0
        %v817 = vadd.f32 0.0, %v816
        %v818 = vpop.f32.mrf.mxu0
        %v819 = vpop.f32.mrf.mxu0
        %v820 = vadd.f32 0.0, %v819
        %v821 = vpop.f32.mrf.mxu0
        %822 = vmatprep.mubr.bf16.mxu0 0
        %823 = vmatmul.mubr.bf16.gmra.mxu0 %v664
        %v824 = vpop.f32.mrf.mxu0
        %v825 = vadd.f32 0.0, %v824
        %v826 = vpop.f32.mrf.mxu0
        %v827 = vpop.f32.mrf.mxu0
        %v828 = vadd.f32 0.0, %v827
        %v829 = vpop.f32.mrf.mxu0
        %830 = vdwg.mxu0
        %v831 = vsel %vm617, %v387, 0
        %v833 = vsel %vm617, %v388, 0
        %v835 = vsel %vm617, %v389, 0
        %v837 = vsel %vm617, %v390, 0
        %v839 = vsel %vm617, %v391, 0
        %v841 = vsel %vm617, %v392, 0
        %v843 = vsel %vm617, %v393, 0
        %v845 = vsel %vm617, %v394, 0
        %v847 = vsel %vm617, %v395, 0
        %v849 = vsel %vm617, %v396, 0
        %v851 = vsel %vm617, %v397, 0
        %v853 = vsel %vm617, %v398, 0
        %v855 = vsel %vm617, %v399, 0
        %v857 = vsel %vm617, %v400, 0
        %v859 = vsel %vm617, %v401, 0
        %v861 = vsel %vm617, %v402, 0
        %v864 = vsel %vm666, %v421, 0
        %866 = vmatprep.subr.bf16.mxu0 0
        %867 = vmatpush1.bf16.msra.mxu0 0
        %868 = vmatprep.subr.bf16.mxu0 0
        %869 = vmatpush1.bf16.msra.mxu0 0
        %870 = vmatprep.subr.bf16.mxu0 0
        %871 = vmatpush1.bf16.msra.mxu0 0
        %872 = vmatprep.subr.bf16.mxu0 0
        %873 = vmatpush1.bf16.msra.mxu0 0
        %874 = vmatprep.subr.bf16.mxu0 0
        %875 = vmatpush1.bf16.msra.mxu0 0
        %876 = vmatprep.subr.bf16.mxu0 0
        %877 = vmatpush1.bf16.msra.mxu0 0
        %878 = vmatprep.subr.bf16.mxu0 0
        %879 = vmatpush1.bf16.msra.mxu0 0
        %880 = vmatprep.subr.bf16.mxu0 0
        %881 = vmatpush1.bf16.msra.mxu0 %v864
        %882 = vmatprep.subr.bf16.mxu0 0
        %883 = vmatpush2.bf16.msra.mxu0 0
        %884 = vmatprep.subr.bf16.mxu0 0
        %885 = vmatpush2.bf16.msra.mxu0 0
        %886 = vmatprep.subr.bf16.mxu0 0
        %887 = vmatpush2.bf16.msra.mxu0 0
        %888 = vmatprep.subr.bf16.mxu0 0
        %889 = vmatpush2.bf16.msra.mxu0 0
        %890 = vmatprep.subr.bf16.mxu0 0
        %891 = vmatpush2.bf16.msra.mxu0 0
        %892 = vmatprep.subr.bf16.mxu0 0
        %893 = vmatpush2.bf16.msra.mxu0 0
        %894 = vmatprep.subr.bf16.mxu0 0
        %895 = vmatpush2.bf16.msra.mxu0 0
        %896 = vmatprep.subr.bf16.mxu0 0
        %897 = vmatpush2.bf16.msra.mxu0 0
        %898 = vmatprep.mubr.bf16.mxu0 0
        %899 = vmatmul.mubr.bf16.gmra.mxu0 %v831
        %v900 = vpop.f32.mrf.mxu0
        %v901 = vadd.f32 %v705, %v900
        %v902 = vpop.f32.mrf.mxu0
        %v903 = vpop.f32.mrf.mxu0
        %v904 = vadd.f32 %v708, %v903
        %v905 = vpop.f32.mrf.mxu0
        %906 = vmatprep.mubr.bf16.mxu0 0
        %907 = vmatmul.mubr.bf16.gmra.mxu0 %v833
        %v908 = vpop.f32.mrf.mxu0
        %v909 = vadd.f32 %v713, %v908
        %v910 = vpop.f32.mrf.mxu0
        %v911 = vpop.f32.mrf.mxu0
        %v912 = vadd.f32 %v716, %v911
        %v913 = vpop.f32.mrf.mxu0
        %914 = vmatprep.mubr.bf16.mxu0 0
        %915 = vmatmul.mubr.bf16.gmra.mxu0 %v835
        %v916 = vpop.f32.mrf.mxu0
        %v917 = vadd.f32 %v721, %v916
        %v918 = vpop.f32.mrf.mxu0
        %v919 = vpop.f32.mrf.mxu0
        %v920 = vadd.f32 %v724, %v919
        %v921 = vpop.f32.mrf.mxu0
        %922 = vmatprep.mubr.bf16.mxu0 0
        %923 = vmatmul.mubr.bf16.gmra.mxu0 %v837
        %v924 = vpop.f32.mrf.mxu0
        %v925 = vadd.f32 %v729, %v924
        %v926 = vpop.f32.mrf.mxu0
        %v927 = vpop.f32.mrf.mxu0
        %v928 = vadd.f32 %v732, %v927
        %v929 = vpop.f32.mrf.mxu0
        %930 = vmatprep.mubr.bf16.mxu0 0
        %931 = vmatmul.mubr.bf16.gmra.mxu0 %v839
        %v932 = vpop.f32.mrf.mxu0
        %v933 = vadd.f32 %v737, %v932
        %v934 = vpop.f32.mrf.mxu0
        %v935 = vpop.f32.mrf.mxu0
        %v936 = vadd.f32 %v740, %v935
        %v937 = vpop.f32.mrf.mxu0
        %938 = vmatprep.mubr.bf16.mxu0 0
        %939 = vmatmul.mubr.bf16.gmra.mxu0 %v841
        %v940 = vpop.f32.mrf.mxu0
        %v941 = vadd.f32 %v745, %v940
        %v942 = vpop.f32.mrf.mxu0
        %v943 = vpop.f32.mrf.mxu0
        %v944 = vadd.f32 %v748, %v943
        %v945 = vpop.f32.mrf.mxu0
        %946 = vmatprep.mubr.bf16.mxu0 0
        %947 = vmatmul.mubr.bf16.gmra.mxu0 %v843
        %v948 = vpop.f32.mrf.mxu0
        %v949 = vadd.f32 %v753, %v948
        %v950 = vpop.f32.mrf.mxu0
        %v951 = vpop.f32.mrf.mxu0
        %v952 = vadd.f32 %v756, %v951
        %v953 = vpop.f32.mrf.mxu0
        %954 = vmatprep.mubr.bf16.mxu0 0
        %955 = vmatmul.mubr.bf16.gmra.mxu0 %v845
        %v956 = vpop.f32.mrf.mxu0
        %v957 = vadd.f32 %v761, %v956
        %v958 = vpop.f32.mrf.mxu0
        %v959 = vpop.f32.mrf.mxu0
        %v960 = vadd.f32 %v764, %v959
        %v961 = vpop.f32.mrf.mxu0
        %962 = vmatprep.mubr.bf16.mxu0 0
        %963 = vmatmul.mubr.bf16.gmra.mxu0 %v847
        %v964 = vpop.f32.mrf.mxu0
        %v965 = vadd.f32 %v769, %v964
        %v966 = vpop.f32.mrf.mxu0
        %v967 = vpop.f32.mrf.mxu0
        %v968 = vadd.f32 %v772, %v967
        %v969 = vpop.f32.mrf.mxu0
        %970 = vmatprep.mubr.bf16.mxu0 0
        %971 = vmatmul.mubr.bf16.gmra.mxu0 %v849
        %v972 = vpop.f32.mrf.mxu0
        %v973 = vadd.f32 %v777, %v972
        %v974 = vpop.f32.mrf.mxu0
        %v975 = vpop.f32.mrf.mxu0
        %v976 = vadd.f32 %v780, %v975
        %v977 = vpop.f32.mrf.mxu0
        %978 = vmatprep.mubr.bf16.mxu0 0
        %979 = vmatmul.mubr.bf16.gmra.mxu0 %v851
        %v980 = vpop.f32.mrf.mxu0
        %v981 = vadd.f32 %v785, %v980
        %v982 = vpop.f32.mrf.mxu0
        %v983 = vpop.f32.mrf.mxu0
        %v984 = vadd.f32 %v788, %v983
        %v985 = vpop.f32.mrf.mxu0
        %986 = vmatprep.mubr.bf16.mxu0 0
        %987 = vmatmul.mubr.bf16.gmra.mxu0 %v853
        %v988 = vpop.f32.mrf.mxu0
        %v989 = vadd.f32 %v793, %v988
        %v990 = vpop.f32.mrf.mxu0
        %v991 = vpop.f32.mrf.mxu0
        %v992 = vadd.f32 %v796, %v991
        %v993 = vpop.f32.mrf.mxu0
        %994 = vmatprep.mubr.bf16.mxu0 0
        %995 = vmatmul.mubr.bf16.gmra.mxu0 %v855
        %v996 = vpop.f32.mrf.mxu0
        %v997 = vadd.f32 %v801, %v996
        %v998 = vpop.f32.mrf.mxu0
        %v999 = vpop.f32.mrf.mxu0
        %v1000 = vadd.f32 %v804, %v999
        %v1001 = vpop.f32.mrf.mxu0
        %1002 = vmatprep.mubr.bf16.mxu0 0
        %1003 = vmatmul.mubr.bf16.gmra.mxu0 %v857
        %v1004 = vpop.f32.mrf.mxu0
        %v1005 = vadd.f32 %v809, %v1004
        %v1006 = vpop.f32.mrf.mxu0
        %v1007 = vpop.f32.mrf.mxu0
        %v1008 = vadd.f32 %v812, %v1007
        %v1009 = vpop.f32.mrf.mxu0
        %1010 = vmatprep.mubr.bf16.mxu0 0
        %1011 = vmatmul.mubr.bf16.gmra.mxu0 %v859
        %v1012 = vpop.f32.mrf.mxu0
        %v1013 = vadd.f32 %v817, %v1012
        %v1014 = vpop.f32.mrf.mxu0
        %v1015 = vpop.f32.mrf.mxu0
        %v1016 = vadd.f32 %v820, %v1015
        %v1017 = vpop.f32.mrf.mxu0
        %1018 = vmatprep.mubr.bf16.mxu0 0
        %1019 = vmatmul.mubr.bf16.gmra.mxu0 %v861
        %v1020 = vpop.f32.mrf.mxu0
        %v1021 = vadd.f32 %v825, %v1020
        %v1022 = vpop.f32.mrf.mxu0
        %v1023 = vpop.f32.mrf.mxu0
        %v1024 = vadd.f32 %v828, %v1023
        %v1025 = vpop.f32.mrf.mxu0
        %1026 = vdwg.mxu0
        %vm1059 = vcmask 1046528
        %v1060 = vrot.slane %v387, 1
        %v1061 = vrot.slane %v404, 1
        %v1062 = vsel %vm1059, %v1060, %v1061
        %v1063 = vrot.slane %v388, 1
        %v1064 = vrot.slane %v405, 1
        %v1065 = vsel %vm1059, %v1063, %v1064
        %v1066 = vrot.slane %v389, 1
        %v1067 = vrot.slane %v406, 1
        %v1068 = vsel %vm1059, %v1066, %v1067
        %v1069 = vrot.slane %v390, 1
        %v1070 = vrot.slane %v407, 1
        %v1071 = vsel %vm1059, %v1069, %v1070
        %v1072 = vrot.slane %v391, 1
        %v1073 = vrot.slane %v408, 1
        %v1074 = vsel %vm1059, %v1072, %v1073
        %v1075 = vrot.slane %v392, 1
        %v1076 = vrot.slane %v409, 1
        %v1077 = vsel %vm1059, %v1075, %v1076
        %v1078 = vrot.slane %v393, 1
        %v1079 = vrot.slane %v410, 1
        %v1080 = vsel %vm1059, %v1078, %v1079
        %v1081 = vrot.slane %v394, 1
        %v1082 = vrot.slane %v411, 1
        %v1083 = vsel %vm1059, %v1081, %v1082
        %v1084 = vrot.slane %v395, 1
        %v1085 = vrot.slane %v412, 1
        %v1086 = vsel %vm1059, %v1084, %v1085
        %v1087 = vrot.slane %v396, 1
        %v1088 = vrot.slane %v413, 1
        %v1089 = vsel %vm1059, %v1087, %v1088
        %v1090 = vrot.slane %v397, 1
        %v1091 = vrot.slane %v414, 1
        %v1092 = vsel %vm1059, %v1090, %v1091
        %v1093 = vrot.slane %v398, 1
        %v1094 = vrot.slane %v415, 1
        %v1095 = vsel %vm1059, %v1093, %v1094
        %v1096 = vrot.slane %v399, 1
        %v1097 = vrot.slane %v416, 1
        %v1098 = vsel %vm1059, %v1096, %v1097
        %v1099 = vrot.slane %v400, 1
        %v1100 = vrot.slane %v417, 1
        %v1101 = vsel %vm1059, %v1099, %v1100
        %v1102 = vrot.slane %v401, 1
        %v1103 = vrot.slane %v418, 1
        %v1104 = vsel %vm1059, %v1102, %v1103
        %v1105 = vrot.slane %v402, 1
        %v1106 = vrot.slane %v419, 1
        %v1107 = vsel %vm1059, %v1105, %v1106
        %s1108 = scalar_lea.vmem %s1, 4
        %v1109 = vld [vmem:[%s1108] sm:$0x3]
        %v1111 = vsel %vm617, %v1062, 0
        %v1114 = vsel %vm617, %v1065, 0
        %v1117 = vsel %vm617, %v1068, 0
        %v1120 = vsel %vm617, %v1071, 0
        %v1123 = vsel %vm617, %v1074, 0
        %v1126 = vsel %vm617, %v1077, 0
        %v1129 = vsel %vm617, %v1080, 0
        %v1132 = vsel %vm617, %v1083, 0
        %v1135 = vsel %vm617, %v1086, 0
        %v1138 = vsel %vm617, %v1089, 0
        %v1141 = vsel %vm617, %v1092, 0
        %v1144 = vsel %vm617, %v1095, 0
        %v1147 = vsel %vm617, %v1098, 0
        %v1150 = vsel %vm617, %v1101, 0
        %v1153 = vsel %vm617, %v1104, 0
        %v1156 = vsel %vm617, %v1107, 0
        %v1159 = vsel %vm666, %v1109, 0
        %1161 = vmatprep.subr.bf16.mxu0 0
        %1162 = vmatpush1.bf16.msra.mxu0 0
        %1163 = vmatprep.subr.bf16.mxu0 0
        %1164 = vmatpush1.bf16.msra.mxu0 0
        %1165 = vmatprep.subr.bf16.mxu0 0
        %1166 = vmatpush1.bf16.msra.mxu0 0
        %1167 = vmatprep.subr.bf16.mxu0 0
        %1168 = vmatpush1.bf16.msra.mxu0 0
        %1169 = vmatprep.subr.bf16.mxu0 0
        %1170 = vmatpush1.bf16.msra.mxu0 0
        %1171 = vmatprep.subr.bf16.mxu0 0
        %1172 = vmatpush1.bf16.msra.mxu0 0
        %1173 = vmatprep.subr.bf16.mxu0 0
        %1174 = vmatpush1.bf16.msra.mxu0 0
        %1175 = vmatprep.subr.bf16.mxu0 0
        %1176 = vmatpush1.bf16.msra.mxu0 %v1159
        %1177 = vmatprep.subr.bf16.mxu0 0
        %1178 = vmatpush2.bf16.msra.mxu0 0
        %1179 = vmatprep.subr.bf16.mxu0 0
        %1180 = vmatpush2.bf16.msra.mxu0 0
        %1181 = vmatprep.subr.bf16.mxu0 0
        %1182 = vmatpush2.bf16.msra.mxu0 0
        %1183 = vmatprep.subr.bf16.mxu0 0
        %1184 = vmatpush2.bf16.msra.mxu0 0
        %1185 = vmatprep.subr.bf16.mxu0 0
        %1186 = vmatpush2.bf16.msra.mxu0 0
        %1187 = vmatprep.subr.bf16.mxu0 0
        %1188 = vmatpush2.bf16.msra.mxu0 0
        %1189 = vmatprep.subr.bf16.mxu0 0
        %1190 = vmatpush2.bf16.msra.mxu0 0
        %1191 = vmatprep.subr.bf16.mxu0 0
        %1192 = vmatpush2.bf16.msra.mxu0 0
        %1193 = vmatprep.mubr.bf16.mxu0 0
        %1194 = vmatmul.mubr.bf16.gmra.mxu0 %v1111
        %v1195 = vpop.f32.mrf.mxu0
        %v1196 = vadd.f32 0.0, %v1195
        %v1197 = vpop.f32.mrf.mxu0
        %v1198 = vpop.f32.mrf.mxu0
        %v1199 = vadd.f32 0.0, %v1198
        %v1200 = vpop.f32.mrf.mxu0
        %1201 = vmatprep.mubr.bf16.mxu0 0
        %1202 = vmatmul.mubr.bf16.gmra.mxu0 %v1114
        %v1203 = vpop.f32.mrf.mxu0
        %v1204 = vadd.f32 0.0, %v1203
        %v1205 = vpop.f32.mrf.mxu0
        %v1206 = vpop.f32.mrf.mxu0
        %v1207 = vadd.f32 0.0, %v1206
        %v1208 = vpop.f32.mrf.mxu0
        %1209 = vmatprep.mubr.bf16.mxu0 0
        %1210 = vmatmul.mubr.bf16.gmra.mxu0 %v1117
        %v1211 = vpop.f32.mrf.mxu0
        %v1212 = vadd.f32 0.0, %v1211
        %v1213 = vpop.f32.mrf.mxu0
        %v1214 = vpop.f32.mrf.mxu0
        %v1215 = vadd.f32 0.0, %v1214
        %v1216 = vpop.f32.mrf.mxu0
        %1217 = vmatprep.mubr.bf16.mxu0 0
        %1218 = vmatmul.mubr.bf16.gmra.mxu0 %v1120
        %v1219 = vpop.f32.mrf.mxu0
        %v1220 = vadd.f32 0.0, %v1219
        %v1221 = vpop.f32.mrf.mxu0
        %v1222 = vpop.f32.mrf.mxu0
        %v1223 = vadd.f32 0.0, %v1222
        %v1224 = vpop.f32.mrf.mxu0
        %1225 = vmatprep.mubr.bf16.mxu0 0
        %1226 = vmatmul.mubr.bf16.gmra.mxu0 %v1123
        %v1227 = vpop.f32.mrf.mxu0
        %v1228 = vadd.f32 0.0, %v1227
        %v1229 = vpop.f32.mrf.mxu0
        %v1230 = vpop.f32.mrf.mxu0
        %v1231 = vadd.f32 0.0, %v1230
        %v1232 = vpop.f32.mrf.mxu0
        %1233 = vmatprep.mubr.bf16.mxu0 0
        %1234 = vmatmul.mubr.bf16.gmra.mxu0 %v1126
        %v1235 = vpop.f32.mrf.mxu0
        %v1236 = vadd.f32 0.0, %v1235
        %v1237 = vpop.f32.mrf.mxu0
        %v1238 = vpop.f32.mrf.mxu0
        %v1239 = vadd.f32 0.0, %v1238
        %v1240 = vpop.f32.mrf.mxu0
        %1241 = vmatprep.mubr.bf16.mxu0 0
        %1242 = vmatmul.mubr.bf16.gmra.mxu0 %v1129
        %v1243 = vpop.f32.mrf.mxu0
        %v1244 = vadd.f32 0.0, %v1243
        %v1245 = vpop.f32.mrf.mxu0
        %v1246 = vpop.f32.mrf.mxu0
        %v1247 = vadd.f32 0.0, %v1246
        %v1248 = vpop.f32.mrf.mxu0
        %1249 = vmatprep.mubr.bf16.mxu0 0
        %1250 = vmatmul.mubr.bf16.gmra.mxu0 %v1132
        %v1251 = vpop.f32.mrf.mxu0
        %v1252 = vadd.f32 0.0, %v1251
        %v1253 = vpop.f32.mrf.mxu0
        %v1254 = vpop.f32.mrf.mxu0
        %v1255 = vadd.f32 0.0, %v1254
        %v1256 = vpop.f32.mrf.mxu0
        %1257 = vmatprep.mubr.bf16.mxu0 0
        %1258 = vmatmul.mubr.bf16.gmra.mxu0 %v1135
        %v1259 = vpop.f32.mrf.mxu0
        %v1260 = vadd.f32 0.0, %v1259
        %v1261 = vpop.f32.mrf.mxu0
        %v1262 = vpop.f32.mrf.mxu0
        %v1263 = vadd.f32 0.0, %v1262
        %v1264 = vpop.f32.mrf.mxu0
        %1265 = vmatprep.mubr.bf16.mxu0 0
        %1266 = vmatmul.mubr.bf16.gmra.mxu0 %v1138
        %v1267 = vpop.f32.mrf.mxu0
        %v1268 = vadd.f32 0.0, %v1267
        %v1269 = vpop.f32.mrf.mxu0
        %v1270 = vpop.f32.mrf.mxu0
        %v1271 = vadd.f32 0.0, %v1270
        %v1272 = vpop.f32.mrf.mxu0
        %1273 = vmatprep.mubr.bf16.mxu0 0
        %1274 = vmatmul.mubr.bf16.gmra.mxu0 %v1141
        %v1275 = vpop.f32.mrf.mxu0
        %v1276 = vadd.f32 0.0, %v1275
        %v1277 = vpop.f32.mrf.mxu0
        %v1278 = vpop.f32.mrf.mxu0
        %v1279 = vadd.f32 0.0, %v1278
        %v1280 = vpop.f32.mrf.mxu0
        %1281 = vmatprep.mubr.bf16.mxu0 0
        %1282 = vmatmul.mubr.bf16.gmra.mxu0 %v1144
        %v1283 = vpop.f32.mrf.mxu0
        %v1284 = vadd.f32 0.0, %v1283
        %v1285 = vpop.f32.mrf.mxu0
        %v1286 = vpop.f32.mrf.mxu0
        %v1287 = vadd.f32 0.0, %v1286
        %v1288 = vpop.f32.mrf.mxu0
        %1289 = vmatprep.mubr.bf16.mxu0 0
        %1290 = vmatmul.mubr.bf16.gmra.mxu0 %v1147
        %v1291 = vpop.f32.mrf.mxu0
        %v1292 = vadd.f32 0.0, %v1291
        %v1293 = vpop.f32.mrf.mxu0
        %v1294 = vpop.f32.mrf.mxu0
        %v1295 = vadd.f32 0.0, %v1294
        %v1296 = vpop.f32.mrf.mxu0
        %1297 = vmatprep.mubr.bf16.mxu0 0
        %1298 = vmatmul.mubr.bf16.gmra.mxu0 %v1150
        %v1299 = vpop.f32.mrf.mxu0
        %v1300 = vadd.f32 0.0, %v1299
        %v1301 = vpop.f32.mrf.mxu0
        %v1302 = vpop.f32.mrf.mxu0
        %v1303 = vadd.f32 0.0, %v1302
        %v1304 = vpop.f32.mrf.mxu0
        %1305 = vmatprep.mubr.bf16.mxu0 0
        %1306 = vmatmul.mubr.bf16.gmra.mxu0 %v1153
        %v1307 = vpop.f32.mrf.mxu0
        %v1308 = vadd.f32 0.0, %v1307
        %v1309 = vpop.f32.mrf.mxu0
        %v1310 = vpop.f32.mrf.mxu0
        %v1311 = vadd.f32 0.0, %v1310
        %v1312 = vpop.f32.mrf.mxu0
        %1313 = vmatprep.mubr.bf16.mxu0 0
        %1314 = vmatmul.mubr.bf16.gmra.mxu0 %v1156
        %v1315 = vpop.f32.mrf.mxu0
        %v1316 = vadd.f32 0.0, %v1315
        %v1317 = vpop.f32.mrf.mxu0
        %v1318 = vpop.f32.mrf.mxu0
        %v1319 = vadd.f32 0.0, %v1318
        %v1320 = vpop.f32.mrf.mxu0
        %1321 = vdwg.mxu0
        %v1322 = vadd.f32 %v901, %v1196
        %v1323 = vadd.f32 %v904, %v1199
        %v1324 = vadd.f32 %v909, %v1204
        %v1325 = vadd.f32 %v912, %v1207
        %v1326 = vadd.f32 %v917, %v1212
        %v1327 = vadd.f32 %v920, %v1215
        %v1328 = vadd.f32 %v925, %v1220
        %v1329 = vadd.f32 %v928, %v1223
        %v1330 = vadd.f32 %v933, %v1228
        %v1331 = vadd.f32 %v936, %v1231
        %v1332 = vadd.f32 %v941, %v1236
        %v1333 = vadd.f32 %v944, %v1239
        %v1334 = vadd.f32 %v949, %v1244
        %v1335 = vadd.f32 %v952, %v1247
        %v1336 = vadd.f32 %v957, %v1252
        %v1337 = vadd.f32 %v960, %v1255
        %v1338 = vadd.f32 %v965, %v1260
        %v1339 = vadd.f32 %v968, %v1263
        %v1340 = vadd.f32 %v973, %v1268
        %v1341 = vadd.f32 %v976, %v1271
        %v1342 = vadd.f32 %v981, %v1276
        %v1343 = vadd.f32 %v984, %v1279
        %v1344 = vadd.f32 %v989, %v1284
        %v1345 = vadd.f32 %v992, %v1287
        %v1346 = vadd.f32 %v997, %v1292
        %v1347 = vadd.f32 %v1000, %v1295
        %v1348 = vadd.f32 %v1005, %v1300
        %v1349 = vadd.f32 %v1008, %v1303
        %v1350 = vadd.f32 %v1013, %v1308
        %v1351 = vadd.f32 %v1016, %v1311
        %v1352 = vadd.f32 %v1021, %v1316
        %v1353 = vadd.f32 %v1024, %v1319
        %s1354 = scalar_lea.vmem %s1, 6
        %v1355 = vld [vmem:[%s1354] sm:$0x3]
        %v1357 = vsel %vm617, %v403, 0
        %v1360 = vsel %vm666, %v1355, 0
        %1362 = vmatprep.subr.bf16.mxu0 0
        %1363 = vmatpush1.bf16.msra.mxu0 0
        %1364 = vmatprep.subr.bf16.mxu0 0
        %1365 = vmatpush1.bf16.msra.mxu0 0
        %1366 = vmatprep.subr.bf16.mxu0 0
        %1367 = vmatpush1.bf16.msra.mxu0 0
        %1368 = vmatprep.subr.bf16.mxu0 0
        %1369 = vmatpush1.bf16.msra.mxu0 0
        %1370 = vmatprep.subr.bf16.mxu0 0
        %1371 = vmatpush1.bf16.msra.mxu0 0
        %1372 = vmatprep.subr.bf16.mxu0 0
        %1373 = vmatpush1.bf16.msra.mxu0 0
        %1374 = vmatprep.subr.bf16.mxu0 0
        %1375 = vmatpush1.bf16.msra.mxu0 0
        %1376 = vmatprep.subr.bf16.mxu0 0
        %1377 = vmatpush1.bf16.msra.mxu0 %v1360
        %1378 = vmatprep.subr.bf16.mxu0 0
        %1379 = vmatpush2.bf16.msra.mxu0 0
        %1380 = vmatprep.subr.bf16.mxu0 0
        %1381 = vmatpush2.bf16.msra.mxu0 0
        %1382 = vmatprep.subr.bf16.mxu0 0
        %1383 = vmatpush2.bf16.msra.mxu0 0
        %1384 = vmatprep.subr.bf16.mxu0 0
        %1385 = vmatpush2.bf16.msra.mxu0 0
        %1386 = vmatprep.subr.bf16.mxu0 0
        %1387 = vmatpush2.bf16.msra.mxu0 0
        %1388 = vmatprep.subr.bf16.mxu0 0
        %1389 = vmatpush2.bf16.msra.mxu0 0
        %1390 = vmatprep.subr.bf16.mxu0 0
        %1391 = vmatpush2.bf16.msra.mxu0 0
        %1392 = vmatprep.subr.bf16.mxu0 0
        %1393 = vmatpush2.bf16.msra.mxu0 0
        %1394 = vmatprep.mubr.bf16.mxu0 0
        %1395 = vmatmul.mubr.bf16.gmra.mxu0 %v833
        %v1396 = vpop.f32.mrf.mxu0
        %v1397 = vadd.f32 0.0, %v1396
        %v1398 = vpop.f32.mrf.mxu0
        %v1399 = vpop.f32.mrf.mxu0
        %v1400 = vadd.f32 0.0, %v1399
        %v1401 = vpop.f32.mrf.mxu0
        %1402 = vmatprep.mubr.bf16.mxu0 0
        %1403 = vmatmul.mubr.bf16.gmra.mxu0 %v835
        %v1404 = vpop.f32.mrf.mxu0
        %v1405 = vadd.f32 0.0, %v1404
        %v1406 = vpop.f32.mrf.mxu0
        %v1407 = vpop.f32.mrf.mxu0
        %v1408 = vadd.f32 0.0, %v1407
        %v1409 = vpop.f32.mrf.mxu0
        %1410 = vmatprep.mubr.bf16.mxu0 0
        %1411 = vmatmul.mubr.bf16.gmra.mxu0 %v837
        %v1412 = vpop.f32.mrf.mxu0
        %v1413 = vadd.f32 0.0, %v1412
        %v1414 = vpop.f32.mrf.mxu0
        %v1415 = vpop.f32.mrf.mxu0
        %v1416 = vadd.f32 0.0, %v1415
        %v1417 = vpop.f32.mrf.mxu0
        %1418 = vmatprep.mubr.bf16.mxu0 0
        %1419 = vmatmul.mubr.bf16.gmra.mxu0 %v839
        %v1420 = vpop.f32.mrf.mxu0
        %v1421 = vadd.f32 0.0, %v1420
        %v1422 = vpop.f32.mrf.mxu0
        %v1423 = vpop.f32.mrf.mxu0
        %v1424 = vadd.f32 0.0, %v1423
        %v1425 = vpop.f32.mrf.mxu0
        %1426 = vmatprep.mubr.bf16.mxu0 0
        %1427 = vmatmul.mubr.bf16.gmra.mxu0 %v841
        %v1428 = vpop.f32.mrf.mxu0
        %v1429 = vadd.f32 0.0, %v1428
        %v1430 = vpop.f32.mrf.mxu0
        %v1431 = vpop.f32.mrf.mxu0
        %v1432 = vadd.f32 0.0, %v1431
        %v1433 = vpop.f32.mrf.mxu0
        %1434 = vmatprep.mubr.bf16.mxu0 0
        %1435 = vmatmul.mubr.bf16.gmra.mxu0 %v843
        %v1436 = vpop.f32.mrf.mxu0
        %v1437 = vadd.f32 0.0, %v1436
        %v1438 = vpop.f32.mrf.mxu0
        %v1439 = vpop.f32.mrf.mxu0
        %v1440 = vadd.f32 0.0, %v1439
        %v1441 = vpop.f32.mrf.mxu0
        %1442 = vmatprep.mubr.bf16.mxu0 0
        %1443 = vmatmul.mubr.bf16.gmra.mxu0 %v845
        %v1444 = vpop.f32.mrf.mxu0
        %v1445 = vadd.f32 0.0, %v1444
        %v1446 = vpop.f32.mrf.mxu0
        %v1447 = vpop.f32.mrf.mxu0
        %v1448 = vadd.f32 0.0, %v1447
        %v1449 = vpop.f32.mrf.mxu0
        %1450 = vmatprep.mubr.bf16.mxu0 0
        %1451 = vmatmul.mubr.bf16.gmra.mxu0 %v847
        %v1452 = vpop.f32.mrf.mxu0
        %v1453 = vadd.f32 0.0, %v1452
        %v1454 = vpop.f32.mrf.mxu0
        %v1455 = vpop.f32.mrf.mxu0
        %v1456 = vadd.f32 0.0, %v1455
        %v1457 = vpop.f32.mrf.mxu0
        %1458 = vmatprep.mubr.bf16.mxu0 0
        %1459 = vmatmul.mubr.bf16.gmra.mxu0 %v849
        %v1460 = vpop.f32.mrf.mxu0
        %v1461 = vadd.f32 0.0, %v1460
        %v1462 = vpop.f32.mrf.mxu0
        %v1463 = vpop.f32.mrf.mxu0
        %v1464 = vadd.f32 0.0, %v1463
        %v1465 = vpop.f32.mrf.mxu0
        %1466 = vmatprep.mubr.bf16.mxu0 0
        %1467 = vmatmul.mubr.bf16.gmra.mxu0 %v851
        %v1468 = vpop.f32.mrf.mxu0
        %v1469 = vadd.f32 0.0, %v1468
        %v1470 = vpop.f32.mrf.mxu0
        %v1471 = vpop.f32.mrf.mxu0
        %v1472 = vadd.f32 0.0, %v1471
        %v1473 = vpop.f32.mrf.mxu0
        %1474 = vmatprep.mubr.bf16.mxu0 0
        %1475 = vmatmul.mubr.bf16.gmra.mxu0 %v853
        %v1476 = vpop.f32.mrf.mxu0
        %v1477 = vadd.f32 0.0, %v1476
        %v1478 = vpop.f32.mrf.mxu0
        %v1479 = vpop.f32.mrf.mxu0
        %v1480 = vadd.f32 0.0, %v1479
        %v1481 = vpop.f32.mrf.mxu0
        %1482 = vmatprep.mubr.bf16.mxu0 0
        %1483 = vmatmul.mubr.bf16.gmra.mxu0 %v855
        %v1484 = vpop.f32.mrf.mxu0
        %v1485 = vadd.f32 0.0, %v1484
        %v1486 = vpop.f32.mrf.mxu0
        %v1487 = vpop.f32.mrf.mxu0
        %v1488 = vadd.f32 0.0, %v1487
        %v1489 = vpop.f32.mrf.mxu0
        %1490 = vmatprep.mubr.bf16.mxu0 0
        %1491 = vmatmul.mubr.bf16.gmra.mxu0 %v857
        %v1492 = vpop.f32.mrf.mxu0
        %v1493 = vadd.f32 0.0, %v1492
        %v1494 = vpop.f32.mrf.mxu0
        %v1495 = vpop.f32.mrf.mxu0
        %v1496 = vadd.f32 0.0, %v1495
        %v1497 = vpop.f32.mrf.mxu0
        %1498 = vmatprep.mubr.bf16.mxu0 0
        %1499 = vmatmul.mubr.bf16.gmra.mxu0 %v859
        %v1500 = vpop.f32.mrf.mxu0
        %v1501 = vadd.f32 0.0, %v1500
        %v1502 = vpop.f32.mrf.mxu0
        %v1503 = vpop.f32.mrf.mxu0
        %v1504 = vadd.f32 0.0, %v1503
        %v1505 = vpop.f32.mrf.mxu0
        %1506 = vmatprep.mubr.bf16.mxu0 0
        %1507 = vmatmul.mubr.bf16.gmra.mxu0 %v861
        %v1508 = vpop.f32.mrf.mxu0
        %v1509 = vadd.f32 0.0, %v1508
        %v1510 = vpop.f32.mrf.mxu0
        %v1511 = vpop.f32.mrf.mxu0
        %v1512 = vadd.f32 0.0, %v1511
        %v1513 = vpop.f32.mrf.mxu0
        %1514 = vmatprep.mubr.bf16.mxu0 0
        %1515 = vmatmul.mubr.bf16.gmra.mxu0 %v1357
        %v1516 = vpop.f32.mrf.mxu0
        %v1517 = vadd.f32 0.0, %v1516
        %v1518 = vpop.f32.mrf.mxu0
        %v1519 = vpop.f32.mrf.mxu0
        %v1520 = vadd.f32 0.0, %v1519
        %v1521 = vpop.f32.mrf.mxu0
        %1522 = vdwg.mxu0
        %v1523 = vadd.f32 %v1322, %v1397
        %v1524 = vadd.f32 %v1323, %v1400
        %v1525 = vadd.f32 %v1324, %v1405
        %v1526 = vadd.f32 %v1325, %v1408
        %v1527 = vadd.f32 %v1326, %v1413
        %v1528 = vadd.f32 %v1327, %v1416
        %v1529 = vadd.f32 %v1328, %v1421
        %v1530 = vadd.f32 %v1329, %v1424
        %v1531 = vadd.f32 %v1330, %v1429
        %v1532 = vadd.f32 %v1331, %v1432
        %v1533 = vadd.f32 %v1332, %v1437
        %v1534 = vadd.f32 %v1333, %v1440
        %v1535 = vadd.f32 %v1334, %v1445
        %v1536 = vadd.f32 %v1335, %v1448
        %v1537 = vadd.f32 %v1336, %v1453
        %v1538 = vadd.f32 %v1337, %v1456
        %v1539 = vadd.f32 %v1338, %v1461
        %v1540 = vadd.f32 %v1339, %v1464
        %v1541 = vadd.f32 %v1340, %v1469
        %v1542 = vadd.f32 %v1341, %v1472
        %v1543 = vadd.f32 %v1342, %v1477
        %v1544 = vadd.f32 %v1343, %v1480
        %v1545 = vadd.f32 %v1344, %v1485
        %v1546 = vadd.f32 %v1345, %v1488
        %v1547 = vadd.f32 %v1346, %v1493
        %v1548 = vadd.f32 %v1347, %v1496
        %v1549 = vadd.f32 %v1348, %v1501
        %v1550 = vadd.f32 %v1349, %v1504
        %v1551 = vadd.f32 %v1350, %v1509
        %v1552 = vadd.f32 %v1351, %v1512
        %v1553 = vadd.f32 %v1352, %v1517
        %v1554 = vadd.f32 %v1353, %v1520
        %v1555 = vshrl.u32 %v403, 16
        %v1557 = vshll.u32 %v403, 16
        %v1559 = vrot.slane %v1557, 1
        %v1560 = vor.u32 %v1555, %v1559
        %v1562 = vshll.u32 %v420, 16
        %v1564 = vrot.slane %v1562, 1
        %v1565 = vsel %vm422, %v1560, %v1564
        %s1566 = scalar_lea.vmem %s1, 8
        %v1567 = vld [vmem:[%s1566] sm:$0x3]
        %v1569 = vsel %vm617, %v1565, 0
        %v1572 = vsel %vm666, %v1567, 0
        %1574 = vmatprep.subr.bf16.mxu0 0
        %1575 = vmatpush1.bf16.msra.mxu0 0
        %1576 = vmatprep.subr.bf16.mxu0 0
        %1577 = vmatpush1.bf16.msra.mxu0 0
        %1578 = vmatprep.subr.bf16.mxu0 0
        %1579 = vmatpush1.bf16.msra.mxu0 0
        %1580 = vmatprep.subr.bf16.mxu0 0
        %1581 = vmatpush1.bf16.msra.mxu0 0
        %1582 = vmatprep.subr.bf16.mxu0 0
        %1583 = vmatpush1.bf16.msra.mxu0 0
        %1584 = vmatprep.subr.bf16.mxu0 0
        %1585 = vmatpush1.bf16.msra.mxu0 0
        %1586 = vmatprep.subr.bf16.mxu0 0
        %1587 = vmatpush1.bf16.msra.mxu0 0
        %1588 = vmatprep.subr.bf16.mxu0 0
        %1589 = vmatpush1.bf16.msra.mxu0 %v1572
        %1590 = vmatprep.subr.bf16.mxu0 0
        %1591 = vmatpush2.bf16.msra.mxu0 0
        %1592 = vmatprep.subr.bf16.mxu0 0
        %1593 = vmatpush2.bf16.msra.mxu0 0
        %1594 = vmatprep.subr.bf16.mxu0 0
        %1595 = vmatpush2.bf16.msra.mxu0 0
        %1596 = vmatprep.subr.bf16.mxu0 0
        %1597 = vmatpush2.bf16.msra.mxu0 0
        %1598 = vmatprep.subr.bf16.mxu0 0
        %1599 = vmatpush2.bf16.msra.mxu0 0
        %1600 = vmatprep.subr.bf16.mxu0 0
        %1601 = vmatpush2.bf16.msra.mxu0 0
        %1602 = vmatprep.subr.bf16.mxu0 0
        %1603 = vmatpush2.bf16.msra.mxu0 0
        %1604 = vmatprep.subr.bf16.mxu0 0
        %1605 = vmatpush2.bf16.msra.mxu0 0
        %1606 = vmatprep.mubr.bf16.mxu0 0
        %1607 = vmatmul.mubr.bf16.gmra.mxu0 %v622
        %v1608 = vpop.f32.mrf.mxu0
        %v1609 = vadd.f32 0.0, %v1608
        %v1610 = vpop.f32.mrf.mxu0
        %v1611 = vpop.f32.mrf.mxu0
        %v1612 = vadd.f32 0.0, %v1611
        %v1613 = vpop.f32.mrf.mxu0
        %1614 = vmatprep.mubr.bf16.mxu0 0
        %1615 = vmatmul.mubr.bf16.gmra.mxu0 %v625
        %v1616 = vpop.f32.mrf.mxu0
        %v1617 = vadd.f32 0.0, %v1616
        %v1618 = vpop.f32.mrf.mxu0
        %v1619 = vpop.f32.mrf.mxu0
        %v1620 = vadd.f32 0.0, %v1619
        %v1621 = vpop.f32.mrf.mxu0
        %1622 = vmatprep.mubr.bf16.mxu0 0
        %1623 = vmatmul.mubr.bf16.gmra.mxu0 %v628
        %v1624 = vpop.f32.mrf.mxu0
        %v1625 = vadd.f32 0.0, %v1624
        %v1626 = vpop.f32.mrf.mxu0
        %v1627 = vpop.f32.mrf.mxu0
        %v1628 = vadd.f32 0.0, %v1627
        %v1629 = vpop.f32.mrf.mxu0
        %1630 = vmatprep.mubr.bf16.mxu0 0
        %1631 = vmatmul.mubr.bf16.gmra.mxu0 %v631
        %v1632 = vpop.f32.mrf.mxu0
        %v1633 = vadd.f32 0.0, %v1632
        %v1634 = vpop.f32.mrf.mxu0
        %v1635 = vpop.f32.mrf.mxu0
        %v1636 = vadd.f32 0.0, %v1635
        %v1637 = vpop.f32.mrf.mxu0
        %1638 = vmatprep.mubr.bf16.mxu0 0
        %1639 = vmatmul.mubr.bf16.gmra.mxu0 %v634
        %v1640 = vpop.f32.mrf.mxu0
        %v1641 = vadd.f32 0.0, %v1640
        %v1642 = vpop.f32.mrf.mxu0
        %v1643 = vpop.f32.mrf.mxu0
        %v1644 = vadd.f32 0.0, %v1643
        %v1645 = vpop.f32.mrf.mxu0
        %1646 = vmatprep.mubr.bf16.mxu0 0
        %1647 = vmatmul.mubr.bf16.gmra.mxu0 %v637
        %v1648 = vpop.f32.mrf.mxu0
        %v1649 = vadd.f32 0.0, %v1648
        %v1650 = vpop.f32.mrf.mxu0
        %v1651 = vpop.f32.mrf.mxu0
        %v1652 = vadd.f32 0.0, %v1651
        %v1653 = vpop.f32.mrf.mxu0
        %1654 = vmatprep.mubr.bf16.mxu0 0
        %1655 = vmatmul.mubr.bf16.gmra.mxu0 %v640
        %v1656 = vpop.f32.mrf.mxu0
        %v1657 = vadd.f32 0.0, %v1656
        %v1658 = vpop.f32.mrf.mxu0
        %v1659 = vpop.f32.mrf.mxu0
        %v1660 = vadd.f32 0.0, %v1659
        %v1661 = vpop.f32.mrf.mxu0
        %1662 = vmatprep.mubr.bf16.mxu0 0
        %1663 = vmatmul.mubr.bf16.gmra.mxu0 %v643
        %v1664 = vpop.f32.mrf.mxu0
        %v1665 = vadd.f32 0.0, %v1664
        %v1666 = vpop.f32.mrf.mxu0
        %v1667 = vpop.f32.mrf.mxu0
        %v1668 = vadd.f32 0.0, %v1667
        %v1669 = vpop.f32.mrf.mxu0
        %1670 = vmatprep.mubr.bf16.mxu0 0
        %1671 = vmatmul.mubr.bf16.gmra.mxu0 %v646
        %v1672 = vpop.f32.mrf.mxu0
        %v1673 = vadd.f32 0.0, %v1672
        %v1674 = vpop.f32.mrf.mxu0
        %v1675 = vpop.f32.mrf.mxu0
        %v1676 = vadd.f32 0.0, %v1675
        %v1677 = vpop.f32.mrf.mxu0
        %1678 = vmatprep.mubr.bf16.mxu0 0
        %1679 = vmatmul.mubr.bf16.gmra.mxu0 %v649
        %v1680 = vpop.f32.mrf.mxu0
        %v1681 = vadd.f32 0.0, %v1680
        %v1682 = vpop.f32.mrf.mxu0
        %v1683 = vpop.f32.mrf.mxu0
        %v1684 = vadd.f32 0.0, %v1683
        %v1685 = vpop.f32.mrf.mxu0
        %1686 = vmatprep.mubr.bf16.mxu0 0
        %1687 = vmatmul.mubr.bf16.gmra.mxu0 %v652
        %v1688 = vpop.f32.mrf.mxu0
        %v1689 = vadd.f32 0.0, %v1688
        %v1690 = vpop.f32.mrf.mxu0
        %v1691 = vpop.f32.mrf.mxu0
        %v1692 = vadd.f32 0.0, %v1691
        %v1693 = vpop.f32.mrf.mxu0
        %1694 = vmatprep.mubr.bf16.mxu0 0
        %1695 = vmatmul.mubr.bf16.gmra.mxu0 %v655
        %v1696 = vpop.f32.mrf.mxu0
        %v1697 = vadd.f32 0.0, %v1696
        %v1698 = vpop.f32.mrf.mxu0
        %v1699 = vpop.f32.mrf.mxu0
        %v1700 = vadd.f32 0.0, %v1699
        %v1701 = vpop.f32.mrf.mxu0
        %1702 = vmatprep.mubr.bf16.mxu0 0
        %1703 = vmatmul.mubr.bf16.gmra.mxu0 %v658
        %v1704 = vpop.f32.mrf.mxu0
        %v1705 = vadd.f32 0.0, %v1704
        %v1706 = vpop.f32.mrf.mxu0
        %v1707 = vpop.f32.mrf.mxu0
        %v1708 = vadd.f32 0.0, %v1707
        %v1709 = vpop.f32.mrf.mxu0
        %1710 = vmatprep.mubr.bf16.mxu0 0
        %1711 = vmatmul.mubr.bf16.gmra.mxu0 %v661
        %v1712 = vpop.f32.mrf.mxu0
        %v1713 = vadd.f32 0.0, %v1712
        %v1714 = vpop.f32.mrf.mxu0
        %v1715 = vpop.f32.mrf.mxu0
        %v1716 = vadd.f32 0.0, %v1715
        %v1717 = vpop.f32.mrf.mxu0
        %1718 = vmatprep.mubr.bf16.mxu0 0
        %1719 = vmatmul.mubr.bf16.gmra.mxu0 %v664
        %v1720 = vpop.f32.mrf.mxu0
        %v1721 = vadd.f32 0.0, %v1720
        %v1722 = vpop.f32.mrf.mxu0
        %v1723 = vpop.f32.mrf.mxu0
        %v1724 = vadd.f32 0.0, %v1723
        %v1725 = vpop.f32.mrf.mxu0
        %1726 = vmatprep.mubr.bf16.mxu0 0
        %1727 = vmatmul.mubr.bf16.gmra.mxu0 %v1569
        %v1728 = vpop.f32.mrf.mxu0
        %v1729 = vadd.f32 0.0, %v1728
        %v1730 = vpop.f32.mrf.mxu0
        %v1731 = vpop.f32.mrf.mxu0
        %v1732 = vadd.f32 0.0, %v1731
        %v1733 = vpop.f32.mrf.mxu0
        %1734 = vdwg.mxu0
        %v1735 = vadd.f32 %v1523, %v1609
        %v1736 = vadd.f32 %v1524, %v1612
        %v1737 = vadd.f32 %v1525, %v1617
        %v1738 = vadd.f32 %v1526, %v1620
        %v1739 = vadd.f32 %v1527, %v1625
        %v1740 = vadd.f32 %v1528, %v1628
        %v1741 = vadd.f32 %v1529, %v1633
        %v1742 = vadd.f32 %v1530, %v1636
        %v1743 = vadd.f32 %v1531, %v1641
        %v1744 = vadd.f32 %v1532, %v1644
        %v1745 = vadd.f32 %v1533, %v1649
        %v1746 = vadd.f32 %v1534, %v1652
        %v1747 = vadd.f32 %v1535, %v1657
        %v1748 = vadd.f32 %v1536, %v1660
        %v1749 = vadd.f32 %v1537, %v1665
        %v1750 = vadd.f32 %v1538, %v1668
        %v1751 = vadd.f32 %v1539, %v1673
        %v1752 = vadd.f32 %v1540, %v1676
        %v1753 = vadd.f32 %v1541, %v1681
        %v1754 = vadd.f32 %v1542, %v1684
        %v1755 = vadd.f32 %v1543, %v1689
        %v1756 = vadd.f32 %v1544, %v1692
        %v1757 = vadd.f32 %v1545, %v1697
        %v1758 = vadd.f32 %v1546, %v1700
        %v1759 = vadd.f32 %v1547, %v1705
        %v1760 = vadd.f32 %v1548, %v1708
        %v1761 = vadd.f32 %v1549, %v1713
        %v1762 = vadd.f32 %v1550, %v1716
        %v1763 = vadd.f32 %v1551, %v1721
        %v1764 = vadd.f32 %v1552, %v1724
        %v1765 = vadd.f32 %v1553, %v1729
        %v1766 = vadd.f32 %v1554, %v1732
        %v1769 = vrot.slane %v403, 1
        %v1770 = vrot.slane %v420, 1
        %v1771 = vsel %vm1059, %v1769, %v1770
        %s1772 = scalar_lea.vmem %s1, 10
        %v1773 = vld [vmem:[%s1772] sm:$0x3]
        %v1775 = vsel %vm617, %v1771, 0
        %v1778 = vsel %vm666, %v1773, 0
        %1780 = vmatprep.subr.bf16.mxu0 0
        %1781 = vmatpush1.bf16.msra.mxu0 0
        %1782 = vmatprep.subr.bf16.mxu0 0
        %1783 = vmatpush1.bf16.msra.mxu0 0
        %1784 = vmatprep.subr.bf16.mxu0 0
        %1785 = vmatpush1.bf16.msra.mxu0 0
        %1786 = vmatprep.subr.bf16.mxu0 0
        %1787 = vmatpush1.bf16.msra.mxu0 0
        %1788 = vmatprep.subr.bf16.mxu0 0
        %1789 = vmatpush1.bf16.msra.mxu0 0
        %1790 = vmatprep.subr.bf16.mxu0 0
        %1791 = vmatpush1.bf16.msra.mxu0 0
        %1792 = vmatprep.subr.bf16.mxu0 0
        %1793 = vmatpush1.bf16.msra.mxu0 0
        %1794 = vmatprep.subr.bf16.mxu0 0
        %1795 = vmatpush1.bf16.msra.mxu0 %v1778
        %1796 = vmatprep.subr.bf16.mxu0 0
        %1797 = vmatpush2.bf16.msra.mxu0 0
        %1798 = vmatprep.subr.bf16.mxu0 0
        %1799 = vmatpush2.bf16.msra.mxu0 0
        %1800 = vmatprep.subr.bf16.mxu0 0
        %1801 = vmatpush2.bf16.msra.mxu0 0
        %1802 = vmatprep.subr.bf16.mxu0 0
        %1803 = vmatpush2.bf16.msra.mxu0 0
        %1804 = vmatprep.subr.bf16.mxu0 0
        %1805 = vmatpush2.bf16.msra.mxu0 0
        %1806 = vmatprep.subr.bf16.mxu0 0
        %1807 = vmatpush2.bf16.msra.mxu0 0
        %1808 = vmatprep.subr.bf16.mxu0 0
        %1809 = vmatpush2.bf16.msra.mxu0 0
        %1810 = vmatprep.subr.bf16.mxu0 0
        %1811 = vmatpush2.bf16.msra.mxu0 0
        %1812 = vmatprep.mubr.bf16.mxu0 0
        %1813 = vmatmul.mubr.bf16.gmra.mxu0 %v1114
        %v1814 = vpop.f32.mrf.mxu0
        %v1815 = vadd.f32 0.0, %v1814
        %v1816 = vpop.f32.mrf.mxu0
        %v1817 = vpop.f32.mrf.mxu0
        %v1818 = vadd.f32 0.0, %v1817
        %v1819 = vpop.f32.mrf.mxu0
        %1820 = vmatprep.mubr.bf16.mxu0 0
        %1821 = vmatmul.mubr.bf16.gmra.mxu0 %v1117
        %v1822 = vpop.f32.mrf.mxu0
        %v1823 = vadd.f32 0.0, %v1822
        %v1824 = vpop.f32.mrf.mxu0
        %v1825 = vpop.f32.mrf.mxu0
        %v1826 = vadd.f32 0.0, %v1825
        %v1827 = vpop.f32.mrf.mxu0
        %1828 = vmatprep.mubr.bf16.mxu0 0
        %1829 = vmatmul.mubr.bf16.gmra.mxu0 %v1120
        %v1830 = vpop.f32.mrf.mxu0
        %v1831 = vadd.f32 0.0, %v1830
        %v1832 = vpop.f32.mrf.mxu0
        %v1833 = vpop.f32.mrf.mxu0
        %v1834 = vadd.f32 0.0, %v1833
        %v1835 = vpop.f32.mrf.mxu0
        %1836 = vmatprep.mubr.bf16.mxu0 0
        %1837 = vmatmul.mubr.bf16.gmra.mxu0 %v1123
        %v1838 = vpop.f32.mrf.mxu0
        %v1839 = vadd.f32 0.0, %v1838
        %v1840 = vpop.f32.mrf.mxu0
        %v1841 = vpop.f32.mrf.mxu0
        %v1842 = vadd.f32 0.0, %v1841
        %v1843 = vpop.f32.mrf.mxu0
        %1844 = vmatprep.mubr.bf16.mxu0 0
        %1845 = vmatmul.mubr.bf16.gmra.mxu0 %v1126
        %v1846 = vpop.f32.mrf.mxu0
        %v1847 = vadd.f32 0.0, %v1846
        %v1848 = vpop.f32.mrf.mxu0
        %v1849 = vpop.f32.mrf.mxu0
        %v1850 = vadd.f32 0.0, %v1849
        %v1851 = vpop.f32.mrf.mxu0
        %1852 = vmatprep.mubr.bf16.mxu0 0
        %1853 = vmatmul.mubr.bf16.gmra.mxu0 %v1129
        %v1854 = vpop.f32.mrf.mxu0
        %v1855 = vadd.f32 0.0, %v1854
        %v1856 = vpop.f32.mrf.mxu0
        %v1857 = vpop.f32.mrf.mxu0
        %v1858 = vadd.f32 0.0, %v1857
        %v1859 = vpop.f32.mrf.mxu0
        %1860 = vmatprep.mubr.bf16.mxu0 0
        %1861 = vmatmul.mubr.bf16.gmra.mxu0 %v1132
        %v1862 = vpop.f32.mrf.mxu0
        %v1863 = vadd.f32 0.0, %v1862
        %v1864 = vpop.f32.mrf.mxu0
        %v1865 = vpop.f32.mrf.mxu0
        %v1866 = vadd.f32 0.0, %v1865
        %v1867 = vpop.f32.mrf.mxu0
        %1868 = vmatprep.mubr.bf16.mxu0 0
        %1869 = vmatmul.mubr.bf16.gmra.mxu0 %v1135
        %v1870 = vpop.f32.mrf.mxu0
        %v1871 = vadd.f32 0.0, %v1870
        %v1872 = vpop.f32.mrf.mxu0
        %v1873 = vpop.f32.mrf.mxu0
        %v1874 = vadd.f32 0.0, %v1873
        %v1875 = vpop.f32.mrf.mxu0
        %1876 = vmatprep.mubr.bf16.mxu0 0
        %1877 = vmatmul.mubr.bf16.gmra.mxu0 %v1138
        %v1878 = vpop.f32.mrf.mxu0
        %v1879 = vadd.f32 0.0, %v1878
        %v1880 = vpop.f32.mrf.mxu0
        %v1881 = vpop.f32.mrf.mxu0
        %v1882 = vadd.f32 0.0, %v1881
        %v1883 = vpop.f32.mrf.mxu0
        %1884 = vmatprep.mubr.bf16.mxu0 0
        %1885 = vmatmul.mubr.bf16.gmra.mxu0 %v1141
        %v1886 = vpop.f32.mrf.mxu0
        %v1887 = vadd.f32 0.0, %v1886
        %v1888 = vpop.f32.mrf.mxu0
        %v1889 = vpop.f32.mrf.mxu0
        %v1890 = vadd.f32 0.0, %v1889
        %v1891 = vpop.f32.mrf.mxu0
        %1892 = vmatprep.mubr.bf16.mxu0 0
        %1893 = vmatmul.mubr.bf16.gmra.mxu0 %v1144
        %v1894 = vpop.f32.mrf.mxu0
        %v1895 = vadd.f32 0.0, %v1894
        %v1896 = vpop.f32.mrf.mxu0
        %v1897 = vpop.f32.mrf.mxu0
        %v1898 = vadd.f32 0.0, %v1897
        %v1899 = vpop.f32.mrf.mxu0
        %1900 = vmatprep.mubr.bf16.mxu0 0
        %1901 = vmatmul.mubr.bf16.gmra.mxu0 %v1147
        %v1902 = vpop.f32.mrf.mxu0
        %v1903 = vadd.f32 0.0, %v1902
        %v1904 = vpop.f32.mrf.mxu0
        %v1905 = vpop.f32.mrf.mxu0
        %v1906 = vadd.f32 0.0, %v1905
        %v1907 = vpop.f32.mrf.mxu0
        %1908 = vmatprep.mubr.bf16.mxu0 0
        %1909 = vmatmul.mubr.bf16.gmra.mxu0 %v1150
        %v1910 = vpop.f32.mrf.mxu0
        %v1911 = vadd.f32 0.0, %v1910
        %v1912 = vpop.f32.mrf.mxu0
        %v1913 = vpop.f32.mrf.mxu0
        %v1914 = vadd.f32 0.0, %v1913
        %v1915 = vpop.f32.mrf.mxu0
        %1916 = vmatprep.mubr.bf16.mxu0 0
        %1917 = vmatmul.mubr.bf16.gmra.mxu0 %v1153
        %v1918 = vpop.f32.mrf.mxu0
        %v1919 = vadd.f32 0.0, %v1918
        %v1920 = vpop.f32.mrf.mxu0
        %v1921 = vpop.f32.mrf.mxu0
        %v1922 = vadd.f32 0.0, %v1921
        %v1923 = vpop.f32.mrf.mxu0
        %1924 = vmatprep.mubr.bf16.mxu0 0
        %1925 = vmatmul.mubr.bf16.gmra.mxu0 %v1156
        %v1926 = vpop.f32.mrf.mxu0
        %v1927 = vadd.f32 0.0, %v1926
        %v1928 = vpop.f32.mrf.mxu0
        %v1929 = vpop.f32.mrf.mxu0
        %v1930 = vadd.f32 0.0, %v1929
        %v1931 = vpop.f32.mrf.mxu0
        %1932 = vmatprep.mubr.bf16.mxu0 0
        %1933 = vmatmul.mubr.bf16.gmra.mxu0 %v1775
        %v1934 = vpop.f32.mrf.mxu0
        %v1935 = vadd.f32 0.0, %v1934
        %v1936 = vpop.f32.mrf.mxu0
        %v1937 = vpop.f32.mrf.mxu0
        %v1938 = vadd.f32 0.0, %v1937
        %v1939 = vpop.f32.mrf.mxu0
        %1940 = vdwg.mxu0
        %v1941 = vadd.f32 %v1735, %v1815
        %v1942 = vadd.f32 %v1736, %v1818
        %v1943 = vadd.f32 %v1737, %v1823
        %v1944 = vadd.f32 %v1738, %v1826
        %v1945 = vadd.f32 %v1739, %v1831
        %v1946 = vadd.f32 %v1740, %v1834
        %v1947 = vadd.f32 %v1741, %v1839
        %v1948 = vadd.f32 %v1742, %v1842
        %v1949 = vadd.f32 %v1743, %v1847
        %v1950 = vadd.f32 %v1744, %v1850
        %v1951 = vadd.f32 %v1745, %v1855
        %v1952 = vadd.f32 %v1746, %v1858
        %v1953 = vadd.f32 %v1747, %v1863
        %v1954 = vadd.f32 %v1748, %v1866
        %v1955 = vadd.f32 %v1749, %v1871
        %v1956 = vadd.f32 %v1750, %v1874
        %v1957 = vadd.f32 %v1751, %v1879
        %v1958 = vadd.f32 %v1752, %v1882
        %v1959 = vadd.f32 %v1753, %v1887
        %v1960 = vadd.f32 %v1754, %v1890
        %v1961 = vadd.f32 %v1755, %v1895
        %v1962 = vadd.f32 %v1756, %v1898
        %v1963 = vadd.f32 %v1757, %v1903
        %v1964 = vadd.f32 %v1758, %v1906
        %v1965 = vadd.f32 %v1759, %v1911
        %v1966 = vadd.f32 %v1760, %v1914
        %v1967 = vadd.f32 %v1761, %v1919
        %v1968 = vadd.f32 %v1762, %v1922
        %v1969 = vadd.f32 %v1763, %v1927
        %v1970 = vadd.f32 %v1764, %v1930
        %v1971 = vadd.f32 %v1765, %v1935
        %v1972 = vadd.f32 %v1766, %v1938
        %s1973 = scalar_lea.vmem %s1, 12
        %v1974 = vld [vmem:[%s1973] sm:$0x3]
        %v1976 = vsel %vm666, %v1974, 0
        %1978 = vmatprep.subr.bf16.mxu0 0
        %1979 = vmatpush1.bf16.msra.mxu0 0
        %1980 = vmatprep.subr.bf16.mxu0 0
        %1981 = vmatpush1.bf16.msra.mxu0 0
        %1982 = vmatprep.subr.bf16.mxu0 0
        %1983 = vmatpush1.bf16.msra.mxu0 0
        %1984 = vmatprep.subr.bf16.mxu0 0
        %1985 = vmatpush1.bf16.msra.mxu0 0
        %1986 = vmatprep.subr.bf16.mxu0 0
        %1987 = vmatpush1.bf16.msra.mxu0 0
        %1988 = vmatprep.subr.bf16.mxu0 0
        %1989 = vmatpush1.bf16.msra.mxu0 0
        %1990 = vmatprep.subr.bf16.mxu0 0
        %1991 = vmatpush1.bf16.msra.mxu0 0
        %1992 = vmatprep.subr.bf16.mxu0 0
        %1993 = vmatpush1.bf16.msra.mxu0 %v1976
        %1994 = vmatprep.subr.bf16.mxu0 0
        %1995 = vmatpush2.bf16.msra.mxu0 0
        %1996 = vmatprep.subr.bf16.mxu0 0
        %1997 = vmatpush2.bf16.msra.mxu0 0
        %1998 = vmatprep.subr.bf16.mxu0 0
        %1999 = vmatpush2.bf16.msra.mxu0 0
        %2000 = vmatprep.subr.bf16.mxu0 0
        %2001 = vmatpush2.bf16.msra.mxu0 0
        %2002 = vmatprep.subr.bf16.mxu0 0
        %2003 = vmatpush2.bf16.msra.mxu0 0
        %2004 = vmatprep.subr.bf16.mxu0 0
        %2005 = vmatpush2.bf16.msra.mxu0 0
        %2006 = vmatprep.subr.bf16.mxu0 0
        %2007 = vmatpush2.bf16.msra.mxu0 0
        %2008 = vmatprep.subr.bf16.mxu0 0
        %2009 = vmatpush2.bf16.msra.mxu0 0
        %2010 = vmatprep.mubr.bf16.mxu0 0
        %2011 = vmatmul.mubr.bf16.gmra.mxu0 %v835
        %v2012 = vpop.f32.mrf.mxu0
        %v2013 = vadd.f32 0.0, %v2012
        %v2014 = vpop.f32.mrf.mxu0
        %v2015 = vpop.f32.mrf.mxu0
        %v2016 = vadd.f32 0.0, %v2015
        %v2017 = vpop.f32.mrf.mxu0
        %2018 = vmatprep.mubr.bf16.mxu0 0
        %2019 = vmatmul.mubr.bf16.gmra.mxu0 %v837
        %v2020 = vpop.f32.mrf.mxu0
        %v2021 = vadd.f32 0.0, %v2020
        %v2022 = vpop.f32.mrf.mxu0
        %v2023 = vpop.f32.mrf.mxu0
        %v2024 = vadd.f32 0.0, %v2023
        %v2025 = vpop.f32.mrf.mxu0
        %2026 = vmatprep.mubr.bf16.mxu0 0
        %2027 = vmatmul.mubr.bf16.gmra.mxu0 %v839
        %v2028 = vpop.f32.mrf.mxu0
        %v2029 = vadd.f32 0.0, %v2028
        %v2030 = vpop.f32.mrf.mxu0
        %v2031 = vpop.f32.mrf.mxu0
        %v2032 = vadd.f32 0.0, %v2031
        %v2033 = vpop.f32.mrf.mxu0
        %2034 = vmatprep.mubr.bf16.mxu0 0
        %2035 = vmatmul.mubr.bf16.gmra.mxu0 %v841
        %v2036 = vpop.f32.mrf.mxu0
        %v2037 = vadd.f32 0.0, %v2036
        %v2038 = vpop.f32.mrf.mxu0
        %v2039 = vpop.f32.mrf.mxu0
        %v2040 = vadd.f32 0.0, %v2039
        %v2041 = vpop.f32.mrf.mxu0
        %2042 = vmatprep.mubr.bf16.mxu0 0
        %2043 = vmatmul.mubr.bf16.gmra.mxu0 %v843
        %v2044 = vpop.f32.mrf.mxu0
        %v2045 = vadd.f32 0.0, %v2044
        %v2046 = vpop.f32.mrf.mxu0
        %v2047 = vpop.f32.mrf.mxu0
        %v2048 = vadd.f32 0.0, %v2047
        %v2049 = vpop.f32.mrf.mxu0
        %2050 = vmatprep.mubr.bf16.mxu0 0
        %2051 = vmatmul.mubr.bf16.gmra.mxu0 %v845
        %v2052 = vpop.f32.mrf.mxu0
        %v2053 = vadd.f32 0.0, %v2052
        %v2054 = vpop.f32.mrf.mxu0
        %v2055 = vpop.f32.mrf.mxu0
        %v2056 = vadd.f32 0.0, %v2055
        %v2057 = vpop.f32.mrf.mxu0
        %2058 = vmatprep.mubr.bf16.mxu0 0
        %2059 = vmatmul.mubr.bf16.gmra.mxu0 %v847
        %v2060 = vpop.f32.mrf.mxu0
        %v2061 = vadd.f32 0.0, %v2060
        %v2062 = vpop.f32.mrf.mxu0
        %v2063 = vpop.f32.mrf.mxu0
        %v2064 = vadd.f32 0.0, %v2063
        %v2065 = vpop.f32.mrf.mxu0
        %2066 = vmatprep.mubr.bf16.mxu0 0
        %2067 = vmatmul.mubr.bf16.gmra.mxu0 %v849
        %v2068 = vpop.f32.mrf.mxu0
        %v2069 = vadd.f32 0.0, %v2068
        %v2070 = vpop.f32.mrf.mxu0
        %v2071 = vpop.f32.mrf.mxu0
        %v2072 = vadd.f32 0.0, %v2071
        %v2073 = vpop.f32.mrf.mxu0
        %2074 = vmatprep.mubr.bf16.mxu0 0
        %2075 = vmatmul.mubr.bf16.gmra.mxu0 %v851
        %v2076 = vpop.f32.mrf.mxu0
        %v2077 = vadd.f32 0.0, %v2076
        %v2078 = vpop.f32.mrf.mxu0
        %v2079 = vpop.f32.mrf.mxu0
        %v2080 = vadd.f32 0.0, %v2079
        %v2081 = vpop.f32.mrf.mxu0
        %2082 = vmatprep.mubr.bf16.mxu0 0
        %2083 = vmatmul.mubr.bf16.gmra.mxu0 %v853
        %v2084 = vpop.f32.mrf.mxu0
        %v2085 = vadd.f32 0.0, %v2084
        %v2086 = vpop.f32.mrf.mxu0
        %v2087 = vpop.f32.mrf.mxu0
        %v2088 = vadd.f32 0.0, %v2087
        %v2089 = vpop.f32.mrf.mxu0
        %2090 = vmatprep.mubr.bf16.mxu0 0
        %2091 = vmatmul.mubr.bf16.gmra.mxu0 %v855
        %v2092 = vpop.f32.mrf.mxu0
        %v2093 = vadd.f32 0.0, %v2092
        %v2094 = vpop.f32.mrf.mxu0
        %v2095 = vpop.f32.mrf.mxu0
        %v2096 = vadd.f32 0.0, %v2095
        %v2097 = vpop.f32.mrf.mxu0
        %2098 = vmatprep.mubr.bf16.mxu0 0
        %2099 = vmatmul.mubr.bf16.gmra.mxu0 %v857
        %v2100 = vpop.f32.mrf.mxu0
        %v2101 = vadd.f32 0.0, %v2100
        %v2102 = vpop.f32.mrf.mxu0
        %v2103 = vpop.f32.mrf.mxu0
        %v2104 = vadd.f32 0.0, %v2103
        %v2105 = vpop.f32.mrf.mxu0
        %2106 = vmatprep.mubr.bf16.mxu0 0
        %2107 = vmatmul.mubr.bf16.gmra.mxu0 %v859
        %v2108 = vpop.f32.mrf.mxu0
        %v2109 = vadd.f32 0.0, %v2108
        %v2110 = vpop.f32.mrf.mxu0
        %v2111 = vpop.f32.mrf.mxu0
        %v2112 = vadd.f32 0.0, %v2111
        %v2113 = vpop.f32.mrf.mxu0
        %2114 = vmatprep.mubr.bf16.mxu0 0
        %2115 = vmatmul.mubr.bf16.gmra.mxu0 %v861
        %v2116 = vpop.f32.mrf.mxu0
        %v2117 = vadd.f32 0.0, %v2116
        %v2118 = vpop.f32.mrf.mxu0
        %v2119 = vpop.f32.mrf.mxu0
        %v2120 = vadd.f32 0.0, %v2119
        %v2121 = vpop.f32.mrf.mxu0
        %2122 = vmatprep.mubr.bf16.mxu0 0
        %2123 = vmatmul.mubr.bf16.gmra.mxu0 %v1357
        %v2124 = vpop.f32.mrf.mxu0
        %v2125 = vadd.f32 0.0, %v2124
        %v2126 = vpop.f32.mrf.mxu0
        %v2127 = vpop.f32.mrf.mxu0
        %v2128 = vadd.f32 0.0, %v2127
        %v2129 = vpop.f32.mrf.mxu0
        %2130 = vmatprep.mubr.bf16.mxu0 0
        %2131 = vmatmul.mubr.bf16.gmra.mxu0 %v831
        %v2132 = vpop.f32.mrf.mxu0
        %v2133 = vadd.f32 0.0, %v2132
        %v2134 = vpop.f32.mrf.mxu0
        %v2135 = vpop.f32.mrf.mxu0
        %v2136 = vadd.f32 0.0, %v2135
        %v2137 = vpop.f32.mrf.mxu0
        %2138 = vdwg.mxu0
        %v2139 = vadd.f32 %v1941, %v2013
        %v2140 = vadd.f32 %v1942, %v2016
        %v2141 = vadd.f32 %v1943, %v2021
        %v2142 = vadd.f32 %v1944, %v2024
        %v2143 = vadd.f32 %v1945, %v2029
        %v2144 = vadd.f32 %v1946, %v2032
        %v2145 = vadd.f32 %v1947, %v2037
        %v2146 = vadd.f32 %v1948, %v2040
        %v2147 = vadd.f32 %v1949, %v2045
        %v2148 = vadd.f32 %v1950, %v2048
        %v2149 = vadd.f32 %v1951, %v2053
        %v2150 = vadd.f32 %v1952, %v2056
        %v2151 = vadd.f32 %v1953, %v2061
        %v2152 = vadd.f32 %v1954, %v2064
        %v2153 = vadd.f32 %v1955, %v2069
        %v2154 = vadd.f32 %v1956, %v2072
        %v2155 = vadd.f32 %v1957, %v2077
        %v2156 = vadd.f32 %v1958, %v2080
        %v2157 = vadd.f32 %v1959, %v2085
        %v2158 = vadd.f32 %v1960, %v2088
        %v2159 = vadd.f32 %v1961, %v2093
        %v2160 = vadd.f32 %v1962, %v2096
        %v2161 = vadd.f32 %v1963, %v2101
        %v2162 = vadd.f32 %v1964, %v2104
        %v2163 = vadd.f32 %v1965, %v2109
        %v2164 = vadd.f32 %v1966, %v2112
        %v2165 = vadd.f32 %v1967, %v2117
        %v2166 = vadd.f32 %v1968, %v2120
        %v2167 = vadd.f32 %v1969, %v2125
        %v2168 = vadd.f32 %v1970, %v2128
        %v2169 = vadd.f32 %v1971, %v2133
        %v2170 = vadd.f32 %v1972, %v2136
        %s2171 = scalar_lea.vmem %s1, 14
        %v2172 = vld [vmem:[%s2171] sm:$0x3]
        %v2174 = vsel %vm666, %v2172, 0
        %2176 = vmatprep.subr.bf16.mxu0 0
        %2177 = vmatpush1.bf16.msra.mxu0 0
        %2178 = vmatprep.subr.bf16.mxu0 0
        %2179 = vmatpush1.bf16.msra.mxu0 0
        %2180 = vmatprep.subr.bf16.mxu0 0
        %2181 = vmatpush1.bf16.msra.mxu0 0
        %2182 = vmatprep.subr.bf16.mxu0 0
        %2183 = vmatpush1.bf16.msra.mxu0 0
        %2184 = vmatprep.subr.bf16.mxu0 0
        %2185 = vmatpush1.bf16.msra.mxu0 0
        %2186 = vmatprep.subr.bf16.mxu0 0
        %2187 = vmatpush1.bf16.msra.mxu0 0
        %2188 = vmatprep.subr.bf16.mxu0 0
        %2189 = vmatpush1.bf16.msra.mxu0 0
        %2190 = vmatprep.subr.bf16.mxu0 0
        %2191 = vmatpush1.bf16.msra.mxu0 %v2174
        %2192 = vmatprep.subr.bf16.mxu0 0
        %2193 = vmatpush2.bf16.msra.mxu0 0
        %2194 = vmatprep.subr.bf16.mxu0 0
        %2195 = vmatpush2.bf16.msra.mxu0 0
        %2196 = vmatprep.subr.bf16.mxu0 0
        %2197 = vmatpush2.bf16.msra.mxu0 0
        %2198 = vmatprep.subr.bf16.mxu0 0
        %2199 = vmatpush2.bf16.msra.mxu0 0
        %2200 = vmatprep.subr.bf16.mxu0 0
        %2201 = vmatpush2.bf16.msra.mxu0 0
        %2202 = vmatprep.subr.bf16.mxu0 0
        %2203 = vmatpush2.bf16.msra.mxu0 0
        %2204 = vmatprep.subr.bf16.mxu0 0
        %2205 = vmatpush2.bf16.msra.mxu0 0
        %2206 = vmatprep.subr.bf16.mxu0 0
        %2207 = vmatpush2.bf16.msra.mxu0 0
        %2208 = vmatprep.mubr.bf16.mxu0 0
        %2209 = vmatmul.mubr.bf16.gmra.mxu0 %v625
        %v2210 = vpop.f32.mrf.mxu0
        %v2211 = vadd.f32 0.0, %v2210
        %v2212 = vpop.f32.mrf.mxu0
        %v2213 = vpop.f32.mrf.mxu0
        %v2214 = vadd.f32 0.0, %v2213
        %v2215 = vpop.f32.mrf.mxu0
        %2216 = vmatprep.mubr.bf16.mxu0 0
        %2217 = vmatmul.mubr.bf16.gmra.mxu0 %v628
        %v2218 = vpop.f32.mrf.mxu0
        %v2219 = vadd.f32 0.0, %v2218
        %v2220 = vpop.f32.mrf.mxu0
        %v2221 = vpop.f32.mrf.mxu0
        %v2222 = vadd.f32 0.0, %v2221
        %v2223 = vpop.f32.mrf.mxu0
        %2224 = vmatprep.mubr.bf16.mxu0 0
        %2225 = vmatmul.mubr.bf16.gmra.mxu0 %v631
        %v2226 = vpop.f32.mrf.mxu0
        %v2227 = vadd.f32 0.0, %v2226
        %v2228 = vpop.f32.mrf.mxu0
        %v2229 = vpop.f32.mrf.mxu0
        %v2230 = vadd.f32 0.0, %v2229
        %v2231 = vpop.f32.mrf.mxu0
        %2232 = vmatprep.mubr.bf16.mxu0 0
        %2233 = vmatmul.mubr.bf16.gmra.mxu0 %v634
        %v2234 = vpop.f32.mrf.mxu0
        %v2235 = vadd.f32 0.0, %v2234
        %v2236 = vpop.f32.mrf.mxu0
        %v2237 = vpop.f32.mrf.mxu0
        %v2238 = vadd.f32 0.0, %v2237
        %v2239 = vpop.f32.mrf.mxu0
        %2240 = vmatprep.mubr.bf16.mxu0 0
        %2241 = vmatmul.mubr.bf16.gmra.mxu0 %v637
        %v2242 = vpop.f32.mrf.mxu0
        %v2243 = vadd.f32 0.0, %v2242
        %v2244 = vpop.f32.mrf.mxu0
        %v2245 = vpop.f32.mrf.mxu0
        %v2246 = vadd.f32 0.0, %v2245
        %v2247 = vpop.f32.mrf.mxu0
        %2248 = vmatprep.mubr.bf16.mxu0 0
        %2249 = vmatmul.mubr.bf16.gmra.mxu0 %v640
        %v2250 = vpop.f32.mrf.mxu0
        %v2251 = vadd.f32 0.0, %v2250
        %v2252 = vpop.f32.mrf.mxu0
        %v2253 = vpop.f32.mrf.mxu0
        %v2254 = vadd.f32 0.0, %v2253
        %v2255 = vpop.f32.mrf.mxu0
        %2256 = vmatprep.mubr.bf16.mxu0 0
        %2257 = vmatmul.mubr.bf16.gmra.mxu0 %v643
        %v2258 = vpop.f32.mrf.mxu0
        %v2259 = vadd.f32 0.0, %v2258
        %v2260 = vpop.f32.mrf.mxu0
        %v2261 = vpop.f32.mrf.mxu0
        %v2262 = vadd.f32 0.0, %v2261
        %v2263 = vpop.f32.mrf.mxu0
        %2264 = vmatprep.mubr.bf16.mxu0 0
        %2265 = vmatmul.mubr.bf16.gmra.mxu0 %v646
        %v2266 = vpop.f32.mrf.mxu0
        %v2267 = vadd.f32 0.0, %v2266
        %v2268 = vpop.f32.mrf.mxu0
        %v2269 = vpop.f32.mrf.mxu0
        %v2270 = vadd.f32 0.0, %v2269
        %v2271 = vpop.f32.mrf.mxu0
        %2272 = vmatprep.mubr.bf16.mxu0 0
        %2273 = vmatmul.mubr.bf16.gmra.mxu0 %v649
        %v2274 = vpop.f32.mrf.mxu0
        %v2275 = vadd.f32 0.0, %v2274
        %v2276 = vpop.f32.mrf.mxu0
        %v2277 = vpop.f32.mrf.mxu0
        %v2278 = vadd.f32 0.0, %v2277
        %v2279 = vpop.f32.mrf.mxu0
        %2280 = vmatprep.mubr.bf16.mxu0 0
        %2281 = vmatmul.mubr.bf16.gmra.mxu0 %v652
        %v2282 = vpop.f32.mrf.mxu0
        %v2283 = vadd.f32 0.0, %v2282
        %v2284 = vpop.f32.mrf.mxu0
        %v2285 = vpop.f32.mrf.mxu0
        %v2286 = vadd.f32 0.0, %v2285
        %v2287 = vpop.f32.mrf.mxu0
        %2288 = vmatprep.mubr.bf16.mxu0 0
        %2289 = vmatmul.mubr.bf16.gmra.mxu0 %v655
        %v2290 = vpop.f32.mrf.mxu0
        %v2291 = vadd.f32 0.0, %v2290
        %v2292 = vpop.f32.mrf.mxu0
        %v2293 = vpop.f32.mrf.mxu0
        %v2294 = vadd.f32 0.0, %v2293
        %v2295 = vpop.f32.mrf.mxu0
        %2296 = vmatprep.mubr.bf16.mxu0 0
        %2297 = vmatmul.mubr.bf16.gmra.mxu0 %v658
        %v2298 = vpop.f32.mrf.mxu0
        %v2299 = vadd.f32 0.0, %v2298
        %v2300 = vpop.f32.mrf.mxu0
        %v2301 = vpop.f32.mrf.mxu0
        %v2302 = vadd.f32 0.0, %v2301
        %v2303 = vpop.f32.mrf.mxu0
        %2304 = vmatprep.mubr.bf16.mxu0 0
        %2305 = vmatmul.mubr.bf16.gmra.mxu0 %v661
        %v2306 = vpop.f32.mrf.mxu0
        %v2307 = vadd.f32 0.0, %v2306
        %v2308 = vpop.f32.mrf.mxu0
        %v2309 = vpop.f32.mrf.mxu0
        %v2310 = vadd.f32 0.0, %v2309
        %v2311 = vpop.f32.mrf.mxu0
        %2312 = vmatprep.mubr.bf16.mxu0 0
        %2313 = vmatmul.mubr.bf16.gmra.mxu0 %v664
        %v2314 = vpop.f32.mrf.mxu0
        %v2315 = vadd.f32 0.0, %v2314
        %v2316 = vpop.f32.mrf.mxu0
        %v2317 = vpop.f32.mrf.mxu0
        %v2318 = vadd.f32 0.0, %v2317
        %v2319 = vpop.f32.mrf.mxu0
        %2320 = vmatprep.mubr.bf16.mxu0 0
        %2321 = vmatmul.mubr.bf16.gmra.mxu0 %v1569
        %v2322 = vpop.f32.mrf.mxu0
        %v2323 = vadd.f32 0.0, %v2322
        %v2324 = vpop.f32.mrf.mxu0
        %v2325 = vpop.f32.mrf.mxu0
        %v2326 = vadd.f32 0.0, %v2325
        %v2327 = vpop.f32.mrf.mxu0
        %2328 = vmatprep.mubr.bf16.mxu0 0
        %2329 = vmatmul.mubr.bf16.gmra.mxu0 %v619
        %v2330 = vpop.f32.mrf.mxu0
        %v2331 = vadd.f32 0.0, %v2330
        %v2332 = vpop.f32.mrf.mxu0
        %v2333 = vpop.f32.mrf.mxu0
        %v2334 = vadd.f32 0.0, %v2333
        %v2335 = vpop.f32.mrf.mxu0
        %2336 = vdwg.mxu0
        %v2337 = vadd.f32 %v2139, %v2211
        %v2338 = vadd.f32 %v2140, %v2214
        %v2339 = vadd.f32 %v2141, %v2219
        %v2340 = vadd.f32 %v2142, %v2222
        %v2341 = vadd.f32 %v2143, %v2227
        %v2342 = vadd.f32 %v2144, %v2230
        %v2343 = vadd.f32 %v2145, %v2235
        %v2344 = vadd.f32 %v2146, %v2238
        %v2345 = vadd.f32 %v2147, %v2243
        %v2346 = vadd.f32 %v2148, %v2246
        %v2347 = vadd.f32 %v2149, %v2251
        %v2348 = vadd.f32 %v2150, %v2254
        %v2349 = vadd.f32 %v2151, %v2259
        %v2350 = vadd.f32 %v2152, %v2262
        %v2351 = vadd.f32 %v2153, %v2267
        %v2352 = vadd.f32 %v2154, %v2270
        %v2353 = vadd.f32 %v2155, %v2275
        %v2354 = vadd.f32 %v2156, %v2278
        %v2355 = vadd.f32 %v2157, %v2283
        %v2356 = vadd.f32 %v2158, %v2286
        %v2357 = vadd.f32 %v2159, %v2291
        %v2358 = vadd.f32 %v2160, %v2294
        %v2359 = vadd.f32 %v2161, %v2299
        %v2360 = vadd.f32 %v2162, %v2302
        %v2361 = vadd.f32 %v2163, %v2307
        %v2362 = vadd.f32 %v2164, %v2310
        %v2363 = vadd.f32 %v2165, %v2315
        %v2364 = vadd.f32 %v2166, %v2318
        %v2365 = vadd.f32 %v2167, %v2323
        %v2366 = vadd.f32 %v2168, %v2326
        %v2367 = vadd.f32 %v2169, %v2331
        %v2368 = vadd.f32 %v2170, %v2334
        %s2369 = scalar_lea.vmem %s1, 16
        %v2370 = vld [vmem:[%s2369] sm:$0x3]
        %v2372 = vsel %vm666, %v2370, 0
        %2374 = vmatprep.subr.bf16.mxu0 0
        %2375 = vmatpush1.bf16.msra.mxu0 0
        %2376 = vmatprep.subr.bf16.mxu0 0
        %2377 = vmatpush1.bf16.msra.mxu0 0
        %2378 = vmatprep.subr.bf16.mxu0 0
        %2379 = vmatpush1.bf16.msra.mxu0 0
        %2380 = vmatprep.subr.bf16.mxu0 0
        %2381 = vmatpush1.bf16.msra.mxu0 0
        %2382 = vmatprep.subr.bf16.mxu0 0
        %2383 = vmatpush1.bf16.msra.mxu0 0
        %2384 = vmatprep.subr.bf16.mxu0 0
        %2385 = vmatpush1.bf16.msra.mxu0 0
        %2386 = vmatprep.subr.bf16.mxu0 0
        %2387 = vmatpush1.bf16.msra.mxu0 0
        %2388 = vmatprep.subr.bf16.mxu0 0
        %2389 = vmatpush1.bf16.msra.mxu0 %v2372
        %2390 = vmatprep.subr.bf16.mxu0 0
        %2391 = vmatpush2.bf16.msra.mxu0 0
        %2392 = vmatprep.subr.bf16.mxu0 0
        %2393 = vmatpush2.bf16.msra.mxu0 0
        %2394 = vmatprep.subr.bf16.mxu0 0
        %2395 = vmatpush2.bf16.msra.mxu0 0
        %2396 = vmatprep.subr.bf16.mxu0 0
        %2397 = vmatpush2.bf16.msra.mxu0 0
        %2398 = vmatprep.subr.bf16.mxu0 0
        %2399 = vmatpush2.bf16.msra.mxu0 0
        %2400 = vmatprep.subr.bf16.mxu0 0
        %2401 = vmatpush2.bf16.msra.mxu0 0
        %2402 = vmatprep.subr.bf16.mxu0 0
        %2403 = vmatpush2.bf16.msra.mxu0 0
        %2404 = vmatprep.subr.bf16.mxu0 0
        %2405 = vmatpush2.bf16.msra.mxu0 0
        %2406 = vmatprep.mubr.bf16.mxu0 0
        %2407 = vmatmul.mubr.bf16.gmra.mxu0 %v1117
        %v2408 = vpop.f32.mrf.mxu0
        %v2409 = vadd.f32 0.0, %v2408
        %v2410 = vpop.f32.mrf.mxu0
        %v2411 = vpop.f32.mrf.mxu0
        %v2412 = vadd.f32 0.0, %v2411
        %v2413 = vpop.f32.mrf.mxu0
        %2414 = vmatprep.mubr.bf16.mxu0 0
        %2415 = vmatmul.mubr.bf16.gmra.mxu0 %v1120
        %v2416 = vpop.f32.mrf.mxu0
        %v2417 = vadd.f32 0.0, %v2416
        %v2418 = vpop.f32.mrf.mxu0
        %v2419 = vpop.f32.mrf.mxu0
        %v2420 = vadd.f32 0.0, %v2419
        %v2421 = vpop.f32.mrf.mxu0
        %2422 = vmatprep.mubr.bf16.mxu0 0
        %2423 = vmatmul.mubr.bf16.gmra.mxu0 %v1123
        %v2424 = vpop.f32.mrf.mxu0
        %v2425 = vadd.f32 0.0, %v2424
        %v2426 = vpop.f32.mrf.mxu0
        %v2427 = vpop.f32.mrf.mxu0
        %v2428 = vadd.f32 0.0, %v2427
        %v2429 = vpop.f32.mrf.mxu0
        %2430 = vmatprep.mubr.bf16.mxu0 0
        %2431 = vmatmul.mubr.bf16.gmra.mxu0 %v1126
        %v2432 = vpop.f32.mrf.mxu0
        %v2433 = vadd.f32 0.0, %v2432
        %v2434 = vpop.f32.mrf.mxu0
        %v2435 = vpop.f32.mrf.mxu0
        %v2436 = vadd.f32 0.0, %v2435
        %v2437 = vpop.f32.mrf.mxu0
        %2438 = vmatprep.mubr.bf16.mxu0 0
        %2439 = vmatmul.mubr.bf16.gmra.mxu0 %v1129
        %v2440 = vpop.f32.mrf.mxu0
        %v2441 = vadd.f32 0.0, %v2440
        %v2442 = vpop.f32.mrf.mxu0
        %v2443 = vpop.f32.mrf.mxu0
        %v2444 = vadd.f32 0.0, %v2443
        %v2445 = vpop.f32.mrf.mxu0
        %2446 = vmatprep.mubr.bf16.mxu0 0
        %2447 = vmatmul.mubr.bf16.gmra.mxu0 %v1132
        %v2448 = vpop.f32.mrf.mxu0
        %v2449 = vadd.f32 0.0, %v2448
        %v2450 = vpop.f32.mrf.mxu0
        %v2451 = vpop.f32.mrf.mxu0
        %v2452 = vadd.f32 0.0, %v2451
        %v2453 = vpop.f32.mrf.mxu0
        %2454 = vmatprep.mubr.bf16.mxu0 0
        %2455 = vmatmul.mubr.bf16.gmra.mxu0 %v1135
        %v2456 = vpop.f32.mrf.mxu0
        %v2457 = vadd.f32 0.0, %v2456
        %v2458 = vpop.f32.mrf.mxu0
        %v2459 = vpop.f32.mrf.mxu0
        %v2460 = vadd.f32 0.0, %v2459
        %v2461 = vpop.f32.mrf.mxu0
        %2462 = vmatprep.mubr.bf16.mxu0 0
        %2463 = vmatmul.mubr.bf16.gmra.mxu0 %v1138
        %v2464 = vpop.f32.mrf.mxu0
        %v2465 = vadd.f32 0.0, %v2464
        %v2466 = vpop.f32.mrf.mxu0
        %v2467 = vpop.f32.mrf.mxu0
        %v2468 = vadd.f32 0.0, %v2467
        %v2469 = vpop.f32.mrf.mxu0
        %2470 = vmatprep.mubr.bf16.mxu0 0
        %2471 = vmatmul.mubr.bf16.gmra.mxu0 %v1141
        %v2472 = vpop.f32.mrf.mxu0
        %v2473 = vadd.f32 0.0, %v2472
        %v2474 = vpop.f32.mrf.mxu0
        %v2475 = vpop.f32.mrf.mxu0
        %v2476 = vadd.f32 0.0, %v2475
        %v2477 = vpop.f32.mrf.mxu0
        %2478 = vmatprep.mubr.bf16.mxu0 0
        %2479 = vmatmul.mubr.bf16.gmra.mxu0 %v1144
        %v2480 = vpop.f32.mrf.mxu0
        %v2481 = vadd.f32 0.0, %v2480
        %v2482 = vpop.f32.mrf.mxu0
        %v2483 = vpop.f32.mrf.mxu0
        %v2484 = vadd.f32 0.0, %v2483
        %v2485 = vpop.f32.mrf.mxu0
        %2486 = vmatprep.mubr.bf16.mxu0 0
        %2487 = vmatmul.mubr.bf16.gmra.mxu0 %v1147
        %v2488 = vpop.f32.mrf.mxu0
        %v2489 = vadd.f32 0.0, %v2488
        %v2490 = vpop.f32.mrf.mxu0
        %v2491 = vpop.f32.mrf.mxu0
        %v2492 = vadd.f32 0.0, %v2491
        %v2493 = vpop.f32.mrf.mxu0
        %2494 = vmatprep.mubr.bf16.mxu0 0
        %2495 = vmatmul.mubr.bf16.gmra.mxu0 %v1150
        %v2496 = vpop.f32.mrf.mxu0
        %v2497 = vadd.f32 0.0, %v2496
        %v2498 = vpop.f32.mrf.mxu0
        %v2499 = vpop.f32.mrf.mxu0
        %v2500 = vadd.f32 0.0, %v2499
        %v2501 = vpop.f32.mrf.mxu0
        %2502 = vmatprep.mubr.bf16.mxu0 0
        %2503 = vmatmul.mubr.bf16.gmra.mxu0 %v1153
        %v2504 = vpop.f32.mrf.mxu0
        %v2505 = vadd.f32 0.0, %v2504
        %v2506 = vpop.f32.mrf.mxu0
        %v2507 = vpop.f32.mrf.mxu0
        %v2508 = vadd.f32 0.0, %v2507
        %v2509 = vpop.f32.mrf.mxu0
        %2510 = vmatprep.mubr.bf16.mxu0 0
        %2511 = vmatmul.mubr.bf16.gmra.mxu0 %v1156
        %v2512 = vpop.f32.mrf.mxu0
        %v2513 = vadd.f32 0.0, %v2512
        %v2514 = vpop.f32.mrf.mxu0
        %v2515 = vpop.f32.mrf.mxu0
        %v2516 = vadd.f32 0.0, %v2515
        %v2517 = vpop.f32.mrf.mxu0
        %2518 = vmatprep.mubr.bf16.mxu0 0
        %2519 = vmatmul.mubr.bf16.gmra.mxu0 %v1775
        %v2520 = vpop.f32.mrf.mxu0
        %v2521 = vadd.f32 0.0, %v2520
        %v2522 = vpop.f32.mrf.mxu0
        %v2523 = vpop.f32.mrf.mxu0
        %v2524 = vadd.f32 0.0, %v2523
        %v2525 = vpop.f32.mrf.mxu0
        %2526 = vmatprep.mubr.bf16.mxu0 0
        %2527 = vmatmul.mubr.bf16.gmra.mxu0 %v1111
        %v2528 = vpop.f32.mrf.mxu0
        %v2529 = vadd.f32 0.0, %v2528
        %v2530 = vpop.f32.mrf.mxu0
        %v2531 = vpop.f32.mrf.mxu0
        %v2532 = vadd.f32 0.0, %v2531
        %v2533 = vpop.f32.mrf.mxu0
        %2534 = vdwg.mxu0
        %v2535 = vadd.f32 %v2337, %v2409
        %v2536 = vadd.f32 %v2338, %v2412
        %v2537 = vadd.f32 %v2339, %v2417
        %v2538 = vadd.f32 %v2340, %v2420
        %v2539 = vadd.f32 %v2341, %v2425
        %v2540 = vadd.f32 %v2342, %v2428
        %v2541 = vadd.f32 %v2343, %v2433
        %v2542 = vadd.f32 %v2344, %v2436
        %v2543 = vadd.f32 %v2345, %v2441
        %v2544 = vadd.f32 %v2346, %v2444
        %v2545 = vadd.f32 %v2347, %v2449
        %v2546 = vadd.f32 %v2348, %v2452
        %v2547 = vadd.f32 %v2349, %v2457
        %v2548 = vadd.f32 %v2350, %v2460
        %v2549 = vadd.f32 %v2351, %v2465
        %v2550 = vadd.f32 %v2352, %v2468
        %v2551 = vadd.f32 %v2353, %v2473
        %v2552 = vadd.f32 %v2354, %v2476
        %v2553 = vadd.f32 %v2355, %v2481
        %v2554 = vadd.f32 %v2356, %v2484
        %v2555 = vadd.f32 %v2357, %v2489
        %v2556 = vadd.f32 %v2358, %v2492
        %v2557 = vadd.f32 %v2359, %v2497
        %v2558 = vadd.f32 %v2360, %v2500
        %v2559 = vadd.f32 %v2361, %v2505
        %v2560 = vadd.f32 %v2362, %v2508
        %v2561 = vadd.f32 %v2363, %v2513
        %v2562 = vadd.f32 %v2364, %v2516
        %v2563 = vadd.f32 %v2365, %v2521
        %v2564 = vadd.f32 %v2366, %v2524
        %v2565 = vadd.f32 %v2367, %v2529
        %v2566 = vadd.f32 %v2368, %v2532
        %v2567 = vpack.c.bf16 %v2536, %v2535
        %v2568 = vpack.c.bf16 %v2538, %v2537
        %v2569 = vpack.c.bf16 %v2540, %v2539
        %v2570 = vpack.c.bf16 %v2542, %v2541
        %v2571 = vpack.c.bf16 %v2544, %v2543
        %v2572 = vpack.c.bf16 %v2546, %v2545
        %v2573 = vpack.c.bf16 %v2548, %v2547
        %v2574 = vpack.c.bf16 %v2550, %v2549
        %v2575 = vpack.c.bf16 %v2552, %v2551
        %v2576 = vpack.c.bf16 %v2554, %v2553
        %v2577 = vpack.c.bf16 %v2556, %v2555
        %v2578 = vpack.c.bf16 %v2558, %v2557
        %v2579 = vpack.c.bf16 %v2560, %v2559
        %v2580 = vpack.c.bf16 %v2562, %v2561
        %v2581 = vpack.c.bf16 %v2564, %v2563
        %v2582 = vpack.c.bf16 %v2566, %v2565
        %v2599 = vunpack.c.l.b16 %v2567
        %v2600 = vunpack.c.h.b16 %v2567
        %v2601 = vunpack.c.l.b16 %v2568
        %v2602 = vunpack.c.h.b16 %v2568
        %v2603 = vunpack.c.l.b16 %v2569
        %v2604 = vunpack.c.h.b16 %v2569
        %v2605 = vunpack.c.l.b16 %v2570
        %v2606 = vunpack.c.h.b16 %v2570
        %v2607 = vunpack.c.l.b16 %v2571
        %v2608 = vunpack.c.h.b16 %v2571
        %v2609 = vunpack.c.l.b16 %v2572
        %v2610 = vunpack.c.h.b16 %v2572
        %v2611 = vunpack.c.l.b16 %v2573
        %v2612 = vunpack.c.h.b16 %v2573
        %v2613 = vunpack.c.l.b16 %v2574
        %v2614 = vunpack.c.h.b16 %v2574
        %v2615 = vunpack.c.l.b16 %v2575
        %v2616 = vunpack.c.h.b16 %v2575
        %v2617 = vunpack.c.l.b16 %v2576
        %v2618 = vunpack.c.h.b16 %v2576
        %v2619 = vunpack.c.l.b16 %v2577
        %v2620 = vunpack.c.h.b16 %v2577
        %v2621 = vunpack.c.l.b16 %v2578
        %v2622 = vunpack.c.h.b16 %v2578
        %v2623 = vunpack.c.l.b16 %v2579
        %v2624 = vunpack.c.h.b16 %v2579
        %v2625 = vunpack.c.l.b16 %v2580
        %v2626 = vunpack.c.h.b16 %v2580
        %v2627 = vunpack.c.l.b16 %v2581
        %v2628 = vunpack.c.h.b16 %v2581
        %v2629 = vunpack.c.l.b16 %v2582
        %v2630 = vunpack.c.h.b16 %v2582
        %v2631 = vpack.c.b16 %v2599, %v2599
        %v2632 = vpack.c.b16 %v2600, %v2600
        %v2633 = vpack.c.b16 %v2601, %v2601
        %v2634 = vpack.c.b16 %v2602, %v2602
        %v2635 = vpack.c.b16 %v2603, %v2603
        %v2636 = vpack.c.b16 %v2604, %v2604
        %v2637 = vpack.c.b16 %v2605, %v2605
        %v2638 = vpack.c.b16 %v2606, %v2606
        %v2639 = vpack.c.b16 %v2607, %v2607
        %v2640 = vpack.c.b16 %v2608, %v2608
        %v2641 = vpack.c.b16 %v2609, %v2609
        %v2642 = vpack.c.b16 %v2610, %v2610
        %v2643 = vpack.c.b16 %v2611, %v2611
        %v2644 = vpack.c.b16 %v2612, %v2612
        %v2645 = vpack.c.b16 %v2613, %v2613
        %v2646 = vpack.c.b16 %v2614, %v2614
        %v2647 = vpack.c.b16 %v2615, %v2615
        %v2648 = vpack.c.b16 %v2616, %v2616
        %v2649 = vpack.c.b16 %v2617, %v2617
        %v2650 = vpack.c.b16 %v2618, %v2618
        %v2651 = vpack.c.b16 %v2619, %v2619
        %v2652 = vpack.c.b16 %v2620, %v2620
        %v2653 = vpack.c.b16 %v2621, %v2621
        %v2654 = vpack.c.b16 %v2622, %v2622
        %v2655 = vpack.c.b16 %v2623, %v2623
        %v2656 = vpack.c.b16 %v2624, %v2624
        %v2657 = vpack.c.b16 %v2625, %v2625
        %v2658 = vpack.c.b16 %v2626, %v2626
        %v2659 = vpack.c.b16 %v2627, %v2627
        %v2660 = vpack.c.b16 %v2628, %v2628
        %v2661 = vpack.c.b16 %v2629, %v2629
        %v2662 = vpack.c.b16 %v2630, %v2630
        %vm2695 = vcmask 27648
        %2696 = vst.msk [vmem:[%s181] sm:$0xf] %vm2695, %v2631
        %2697 = vst.msk [vmem:[%s181 + $0x4] sm:$0xf] %vm2695, %v2632
        %2698 = vst.msk [vmem:[%s181 + $0x8] sm:$0xf] %vm2695, %v2633
        %2699 = vst.msk [vmem:[%s181 + $0xc] sm:$0xf] %vm2695, %v2634
        %2700 = vst.msk [vmem:[%s181 + $0x10] sm:$0xf] %vm2695, %v2635
        %2701 = vst.msk [vmem:[%s181 + $0x14] sm:$0xf] %vm2695, %v2636
        %2702 = vst.msk [vmem:[%s181 + $0x18] sm:$0xf] %vm2695, %v2637
        %2703 = vst.msk [vmem:[%s181 + $0x1c] sm:$0xf] %vm2695, %v2638
        %2704 = vst.msk [vmem:[%s181 + $0x20] sm:$0xf] %vm2695, %v2639
        %2705 = vst.msk [vmem:[%s181 + $0x24] sm:$0xf] %vm2695, %v2640
        %2706 = vst.msk [vmem:[%s181 + $0x28] sm:$0xf] %vm2695, %v2641
        %2707 = vst.msk [vmem:[%s181 + $0x2c] sm:$0xf] %vm2695, %v2642
        %2708 = vst.msk [vmem:[%s181 + $0x30] sm:$0xf] %vm2695, %v2643
        %2709 = vst.msk [vmem:[%s181 + $0x34] sm:$0xf] %vm2695, %v2644
        %2710 = vst.msk [vmem:[%s181 + $0x38] sm:$0xf] %vm2695, %v2645
        %2711 = vst.msk [vmem:[%s181 + $0x3c] sm:$0xf] %vm2695, %v2646
        %2712 = vst.msk [vmem:[%s181 + $0x40] sm:$0xf] %vm2695, %v2647
        %2713 = vst.msk [vmem:[%s181 + $0x44] sm:$0xf] %vm2695, %v2648
        %2714 = vst.msk [vmem:[%s181 + $0x48] sm:$0xf] %vm2695, %v2649
        %2715 = vst.msk [vmem:[%s181 + $0x4c] sm:$0xf] %vm2695, %v2650
        %2716 = vst.msk [vmem:[%s181 + $0x50] sm:$0xf] %vm2695, %v2651
        %2717 = vst.msk [vmem:[%s181 + $0x54] sm:$0xf] %vm2695, %v2652
        %2718 = vst.msk [vmem:[%s181 + $0x58] sm:$0xf] %vm2695, %v2653
        %2719 = vst.msk [vmem:[%s181 + $0x5c] sm:$0xf] %vm2695, %v2654
        %2720 = vst.msk [vmem:[%s181 + $0x60] sm:$0xf] %vm2695, %v2655
        %2721 = vst.msk [vmem:[%s181 + $0x64] sm:$0xf] %vm2695, %v2656
        %2722 = vst.msk [vmem:[%s181 + $0x68] sm:$0xf] %vm2695, %v2657
        %2723 = vst.msk [vmem:[%s181 + $0x6c] sm:$0xf] %vm2695, %v2658
        %2724 = vst.msk [vmem:[%s181 + $0x70] sm:$0xf] %vm2695, %v2659
        %2725 = vst.msk [vmem:[%s181 + $0x74] sm:$0xf] %vm2695, %v2660
        %2726 = vst.msk [vmem:[%s181 + $0x78] sm:$0xf] %vm2695, %v2661
        %2727 = vst.msk [vmem:[%s181 + $0x7c] sm:$0xf] %vm2695, %v2662
        %v2728 = vsel %vm617, %v2535, 0.0
        %v2729 = vsel %vm617, %v2536, 0.0
        %v2730 = vadd.f32 %v2728, %v2729
        %v2731 = vsel %vm617, %v2537, 0.0
        %v2732 = vadd.f32 %v2730, %v2731
        %v2733 = vsel %vm617, %v2538, 0.0
        %v2734 = vadd.f32 %v2732, %v2733
        %v2735 = vsel %vm617, %v2539, 0.0
        %v2736 = vadd.f32 %v2734, %v2735
        %v2737 = vsel %vm617, %v2540, 0.0
        %v2738 = vadd.f32 %v2736, %v2737
        %v2739 = vsel %vm617, %v2541, 0.0
        %v2740 = vadd.f32 %v2738, %v2739
        %v2741 = vsel %vm617, %v2542, 0.0
        %v2742 = vadd.f32 %v2740, %v2741
        %v2743 = vsel %vm617, %v2543, 0.0
        %v2744 = vadd.f32 %v2742, %v2743
        %v2745 = vsel %vm617, %v2544, 0.0
        %v2746 = vadd.f32 %v2744, %v2745
        %v2747 = vsel %vm617, %v2545, 0.0
        %v2748 = vadd.f32 %v2746, %v2747
        %v2749 = vsel %vm617, %v2546, 0.0
        %v2750 = vadd.f32 %v2748, %v2749
        %v2751 = vsel %vm617, %v2547, 0.0
        %v2752 = vadd.f32 %v2750, %v2751
        %v2753 = vsel %vm617, %v2548, 0.0
        %v2754 = vadd.f32 %v2752, %v2753
        %v2755 = vsel %vm617, %v2549, 0.0
        %v2756 = vadd.f32 %v2754, %v2755
        %v2757 = vsel %vm617, %v2550, 0.0
        %v2758 = vadd.f32 %v2756, %v2757
        %v2759 = vsel %vm617, %v2551, 0.0
        %v2760 = vadd.f32 %v2758, %v2759
        %v2761 = vsel %vm617, %v2552, 0.0
        %v2762 = vadd.f32 %v2760, %v2761
        %v2763 = vsel %vm617, %v2553, 0.0
        %v2764 = vadd.f32 %v2762, %v2763
        %v2765 = vsel %vm617, %v2554, 0.0
        %v2766 = vadd.f32 %v2764, %v2765
        %v2767 = vsel %vm617, %v2555, 0.0
        %v2768 = vadd.f32 %v2766, %v2767
        %v2769 = vsel %vm617, %v2556, 0.0
        %v2770 = vadd.f32 %v2768, %v2769
        %v2771 = vsel %vm617, %v2557, 0.0
        %v2772 = vadd.f32 %v2770, %v2771
        %v2773 = vsel %vm617, %v2558, 0.0
        %v2774 = vadd.f32 %v2772, %v2773
        %v2775 = vsel %vm617, %v2559, 0.0
        %v2776 = vadd.f32 %v2774, %v2775
        %v2777 = vsel %vm617, %v2560, 0.0
        %v2778 = vadd.f32 %v2776, %v2777
        %v2779 = vsel %vm617, %v2561, 0.0
        %v2780 = vadd.f32 %v2778, %v2779
        %v2781 = vsel %vm617, %v2562, 0.0
        %v2782 = vadd.f32 %v2780, %v2781
        %v2783 = vsel %vm617, %v2563, 0.0
        %v2784 = vadd.f32 %v2782, %v2783
        %v2785 = vsel %vm617, %v2564, 0.0
        %v2786 = vadd.f32 %v2784, %v2785
        %v2787 = vsel %vm617, %v2565, 0.0
        %v2788 = vadd.f32 %v2786, %v2787
        %v2789 = vsel %vm617, %v2566, 0.0
        %v2790 = vadd.f32 %v2788, %v2789
        %v2791 = vrot.slane %v2790, 4
        %v2792 = vadd.f32 %v2790, %v2791
        %v2793 = vrot.slane %v2792, 2
        %v2794 = vadd.f32 %v2792, %v2793
        %v2795 = vrot.slane %v2794, 1
        %v2796 = vadd.f32 %v2794, %v2795
        %vm2797 = vcmask 24576
        %2798 = vst.msk [vmem:[%s171] sm:$0x1] %vm2797, %v2796
        %v2799 = vmul.f32 %v2535, %v2535
        %v2800 = vmul.f32 %v2536, %v2536
        %v2801 = vmul.f32 %v2537, %v2537
        %v2802 = vmul.f32 %v2538, %v2538
        %v2803 = vmul.f32 %v2539, %v2539
        %v2804 = vmul.f32 %v2540, %v2540
        %v2805 = vmul.f32 %v2541, %v2541
        %v2806 = vmul.f32 %v2542, %v2542
        %v2807 = vmul.f32 %v2543, %v2543
        %v2808 = vmul.f32 %v2544, %v2544
        %v2809 = vmul.f32 %v2545, %v2545
        %v2810 = vmul.f32 %v2546, %v2546
        %v2811 = vmul.f32 %v2547, %v2547
        %v2812 = vmul.f32 %v2548, %v2548
        %v2813 = vmul.f32 %v2549, %v2549
        %v2814 = vmul.f32 %v2550, %v2550
        %v2815 = vmul.f32 %v2551, %v2551
        %v2816 = vmul.f32 %v2552, %v2552
        %v2817 = vmul.f32 %v2553, %v2553
        %v2818 = vmul.f32 %v2554, %v2554
        %v2819 = vmul.f32 %v2555, %v2555
        %v2820 = vmul.f32 %v2556, %v2556
        %v2821 = vmul.f32 %v2557, %v2557
        %v2822 = vmul.f32 %v2558, %v2558
        %v2823 = vmul.f32 %v2559, %v2559
        %v2824 = vmul.f32 %v2560, %v2560
        %v2825 = vmul.f32 %v2561, %v2561
        %v2826 = vmul.f32 %v2562, %v2562
        %v2827 = vmul.f32 %v2563, %v2563
        %v2828 = vmul.f32 %v2564, %v2564
        %v2829 = vmul.f32 %v2565, %v2565
        %v2830 = vmul.f32 %v2566, %v2566
        %v2831 = vsel %vm617, %v2799, 0.0
        %v2832 = vsel %vm617, %v2800, 0.0
        %v2833 = vadd.f32 %v2831, %v2832
        %v2834 = vsel %vm617, %v2801, 0.0
        %v2835 = vadd.f32 %v2833, %v2834
        %v2836 = vsel %vm617, %v2802, 0.0
        %v2837 = vadd.f32 %v2835, %v2836
        %v2838 = vsel %vm617, %v2803, 0.0
        %v2839 = vadd.f32 %v2837, %v2838
        %v2840 = vsel %vm617, %v2804, 0.0
        %v2841 = vadd.f32 %v2839, %v2840
        %v2842 = vsel %vm617, %v2805, 0.0
        %v2843 = vadd.f32 %v2841, %v2842
        %v2844 = vsel %vm617, %v2806, 0.0
        %v2845 = vadd.f32 %v2843, %v2844
        %v2846 = vsel %vm617, %v2807, 0.0
        %v2847 = vadd.f32 %v2845, %v2846
        %v2848 = vsel %vm617, %v2808, 0.0
        %v2849 = vadd.f32 %v2847, %v2848
        %v2850 = vsel %vm617, %v2809, 0.0
        %v2851 = vadd.f32 %v2849, %v2850
        %v2852 = vsel %vm617, %v2810, 0.0
        %v2853 = vadd.f32 %v2851, %v2852
        %v2854 = vsel %vm617, %v2811, 0.0
        %v2855 = vadd.f32 %v2853, %v2854
        %v2856 = vsel %vm617, %v2812, 0.0
        %v2857 = vadd.f32 %v2855, %v2856
        %v2858 = vsel %vm617, %v2813, 0.0
        %v2859 = vadd.f32 %v2857, %v2858
        %v2860 = vsel %vm617, %v2814, 0.0
        %v2861 = vadd.f32 %v2859, %v2860
        %v2862 = vsel %vm617, %v2815, 0.0
        %v2863 = vadd.f32 %v2861, %v2862
        %v2864 = vsel %vm617, %v2816, 0.0
        %v2865 = vadd.f32 %v2863, %v2864
        %v2866 = vsel %vm617, %v2817, 0.0
        %v2867 = vadd.f32 %v2865, %v2866
        %v2868 = vsel %vm617, %v2818, 0.0
        %v2869 = vadd.f32 %v2867, %v2868
        %v2870 = vsel %vm617, %v2819, 0.0
        %v2871 = vadd.f32 %v2869, %v2870
        %v2872 = vsel %vm617, %v2820, 0.0
        %v2873 = vadd.f32 %v2871, %v2872
        %v2874 = vsel %vm617, %v2821, 0.0
        %v2875 = vadd.f32 %v2873, %v2874
        %v2876 = vsel %vm617, %v2822, 0.0
        %v2877 = vadd.f32 %v2875, %v2876
        %v2878 = vsel %vm617, %v2823, 0.0
        %v2879 = vadd.f32 %v2877, %v2878
        %v2880 = vsel %vm617, %v2824, 0.0
        %v2881 = vadd.f32 %v2879, %v2880
        %v2882 = vsel %vm617, %v2825, 0.0
        %v2883 = vadd.f32 %v2881, %v2882
        %v2884 = vsel %vm617, %v2826, 0.0
        %v2885 = vadd.f32 %v2883, %v2884
        %v2886 = vsel %vm617, %v2827, 0.0
        %v2887 = vadd.f32 %v2885, %v2886
        %v2888 = vsel %vm617, %v2828, 0.0
        %v2889 = vadd.f32 %v2887, %v2888
        %v2890 = vsel %vm617, %v2829, 0.0
        %v2891 = vadd.f32 %v2889, %v2890
        %v2892 = vsel %vm617, %v2830, 0.0
        %v2893 = vadd.f32 %v2891, %v2892
        %v2894 = vrot.slane %v2893, 4
        %v2895 = vadd.f32 %v2893, %v2894
        %v2896 = vrot.slane %v2895, 2
        %v2897 = vadd.f32 %v2895, %v2896
        %v2898 = vrot.slane %v2897, 1
        %v2899 = vadd.f32 %v2897, %v2898
        %2900 = vst.msk [vmem:[%s171 + $0x1] sm:$0x1] %vm2797, %v2899
        %p2901 = scmp.lt.s32.totalorder %s18, 1
        %s2902 = scalar_select %p2901, %s18, 1
        %s2903 = smul.addr %s2902, 32
        %s2904 = smul.addr %s2903, 4
        %s2905 = scalar_lea.vmem %s2, %s2904
        %s2906 = sand.u32 %s99, 1
        %s2907 = scalar_lea.sflag [#allocation3], %s2906
        %s2908 = sand.u32 %s99, 1
        %s2909 = smul.addr %s2908, 2
        %s2910 = scalar_lea.vmem [#allocation2], %s2909
        // Predicated region
        $region29: #{tpu_custom_call.1} parent=27 // pred_check
          %p2911 = pneg %p83
        $region30: #{tpu_custom_call.1} parent=27 // pred_check_branch
          %2913 = sbr.rel (%p2911) target = $region32
        $region31: #{tpu_custom_call.1} parent=27 // pred_region
          _
        $region32: #{tpu_custom_call.1} parent=27 // pred_fallthru
          _
        // Predicated region
        $region33: #{tpu_custom_call.1} parent=27 // pred_check
          %p2914 = pneg %p109
        $region34: #{tpu_custom_call.1} parent=27 // pred_check_branch
          %2916 = sbr.rel (%p2914) target = $region36
        $region35: #{tpu_custom_call.1} parent=27 // pred_region
          %s2918 = ssub.s32 32, 32
          %2919 = vsyncadd %s2907, %s2918
          %s2920 = smul.addr %s18, 32
          %s2921 = scalar_lea.hbm %s3, %s2920
          %s2923 = sshll.u32 %s2910, 4
          %s2924 = int_to_ptr.vmem [resolvable:$true] %s2923
          %2926 = dma.vmem_to_hbm [thread:$0]  %s2924, 32, %s2921, %s2907
        $region36: #{tpu_custom_call.1} parent=27 // pred_fallthru
          _
      $region28: #{tpu_custom_call.1} parent=5 // pred_fallthru
        _
      %p2927 = scmp.le.s32.totalorder 2, %s13
      // Predicated region
      $region37: #{tpu_custom_call.1} parent=5 // pred_check
        %p2928 = pneg %p2927
      $region38: #{tpu_custom_call.1} parent=5 // pred_check_branch
        %2930 = sbr.rel (%p2928) target = $region40
      $region39: #{tpu_custom_call.1} parent=5 // pred_region
        %s2931 = ssub.s32 %s13, 2
        // Predicated region
        $region41: #{tpu_custom_call.1} parent=39 // pred_check
          %p2932 = pneg %p89
        $region42: #{tpu_custom_call.1} parent=39 // pred_check_branch
          %2934 = sbr.rel (%p2932) target = $region44
        $region43: #{tpu_custom_call.1} parent=39 // pred_region
          %p2935 = scmp.lt.s32.totalorder %s19, 1
          %s2936 = scalar_select %p2935, %s19, 1
          %s2937 = smul.addr %s2936, 32
          %s2938 = smul.addr %s2937, 4
          %s2939 = scalar_lea.vmem %s2, %s2938
        $region44: #{tpu_custom_call.1} parent=39 // pred_fallthru
          _
        // Predicated region
        $region45: #{tpu_custom_call.1} parent=39 // pred_check
          %p2940 = pneg %p115
        $region46: #{tpu_custom_call.1} parent=39 // pred_check_branch
          %2942 = sbr.rel (%p2940) target = $region48
        $region47: #{tpu_custom_call.1} parent=39 // pred_region
          %s2943 = sand.u32 %s100, 1
          %s2944 = scalar_lea.sflag [#allocation3], %s2943
          %s2945 = sand.u32 %s100, 1
          %s2946 = smul.addr %s2945, 2
          %s2947 = scalar_lea.vmem [#allocation2], %s2946
          %2948 = dma.done %s2944, 32
        $region48: #{tpu_custom_call.1} parent=39 // pred_fallthru
          _
      $region40: #{tpu_custom_call.1} parent=5 // pred_fallthru
        _
    $region6: #{tpu_custom_call.1} parent=1 // loop_footer
      %s17 = sadd.s32 1, %s13
    $region7: #{tpu_custom_call.1} parent=1 // loop_footer_branch
      %12 = sbr.rel target = $region3
    $region8: #{tpu_custom_call.1} parent=1 // loop_exit
      _
    %2949 = vsyncpa [#allocation3], 1
    %s2950 = scalar_lea.sflag [#allocation3], 1
    %2951 = vsyncpa %s2950, 1

</llo_original>
